<compile_context>
chip_gen: v7x
topology: tpu7x:2x2x1
jax: 0.10.0
libtpu: 0.0.40
codegen_flags: <defaults>
</compile_context>

<pallas_src>
import functools
import math

import jax
import jax.numpy as jnp
import numpy as np
from jax import lax
from jax.experimental import pallas as pl
from jax.experimental.pallas import tpu as pltpu

LN_EPS = 1e-5


# --------------------------------------------------------------------------- helpers
def _layernorm(v, gamma, beta):
    mu = jnp.mean(v, axis=-1, keepdims=True)
    var = jnp.mean((v - mu) ** 2, axis=-1, keepdims=True)
    return (v - mu) * lax.rsqrt(var + LN_EPS) * gamma + beta


def _largest_tile(n, candidates):
    """Largest candidate that divides n; falls back to n (single tile)."""
    for c in candidates:
        if c <= n and n % c == 0:
            return c
    return n


def _pick_batch_tile(batch, seq_len, target_rows=256):
    """Largest divisor TB of `batch` whose (TB*L, D) block is legal (sublane dim a
    multiple of 8, or the whole array) with TB*L near `target_rows`."""
    cap = max(target_rows, seq_len)
    legal = [tb for tb in range(1, batch + 1)
             if batch % tb == 0 and (tb == batch or (tb * seq_len) % 8 == 0)]
    fitting = [tb for tb in legal if tb * seq_len <= cap]
    return fitting[-1] if fitting else legal[0]


def _vmem_limit_bytes():
    """Per-generation VMEM budget: ~100 MiB on 128-MiB chips (v5e/v6e), ~48 MiB on
    64-MiB v7x, conservative 48 MiB if the query is unavailable."""
    cap = None
    if hasattr(pltpu, "get_tpu_info"):
        try:
            cap = getattr(pltpu.get_tpu_info(), "vmem_capacity_bytes", None)
        except Exception:  # hardware-info query only; never masks kernel errors
            cap = None
    if cap is None:
        return 48 * 1024 * 1024
    if cap >= 128 * 1024 * 1024:
        return 100 * 1024 * 1024
    return (cap * 3) // 4


def _param_block_spec(shape):
    """Constant-index parameter block; single-buffered when the API supports it."""
    index_map = lambda g: (0,) * len(shape)
    if hasattr(pl, "Buffered"):
        try:
            # Constant index_map: fetched once; single buffering halves the weights'
            # VMEM footprint (matters most under v7x's 64 MiB VMEM).
            return pl.BlockSpec(shape, index_map, pipeline_mode=pl.Buffered(1))
        except TypeError:
            pass  # older BlockSpec signature without pipeline_mode
    return pl.BlockSpec(shape, index_map)


# --------------------------------------------------------------------------- kernel
def _block_kernel(x_ref, ln1_g_ref, ln1_b_ref, w_qkv_ref, b_qkv_ref,
                  w_o_ref, b_o_ref, ln2_g_ref, ln2_b_ref,
                  w_fc_ref, b_fc_ref, w_pr_ref, b_pr_ref,
                  out_ref, k_sc, v_sc,
                  *, tb, seq_len, d_model, n_head, kv_tile, mlp_row_tile):
    head_dim = d_model // n_head
    scale = 1.0 / math.sqrt(head_dim)
    m_rows = tb * seq_len            # rows handled by this grid step
    bh = tb * n_head                 # fused (batch, head) dimension

    x = x_ref[...]                                                   # (M, D) f32

    # ---- ln_1 + fused QKV projection (bf16 MXU operands, f32 accumulation) ----
    h = _layernorm(x, ln1_g_ref[...], ln1_b_ref[...])
    qkv = jnp.dot(h.astype(jnp.bfloat16), w_qkv_ref[...],
                  preferred_element_type=jnp.float32) + b_qkv_ref[...]   # (M, 3D)

    def split_heads(t):              # (M, D) f32 -> (TB*H, L, hd)
        t = t.reshape(tb, seq_len, n_head, head_dim)
        t = jnp.transpose(t, (0, 2, 1, 3))
        return t.reshape(bh, seq_len, head_dim)

    q = split_heads(qkv[:, :d_model] * scale).astype(jnp.bfloat16)
    k_sc[...] = split_heads(qkv[:, d_model:2 * d_model]).astype(jnp.bfloat16)
    v_sc[...] = split_heads(qkv[:, 2 * d_model:]).astype(jnp.bfloat16)

    # ---- flash-style attention over KV tiles (online softmax) ----
    n_kv = seq_len // kv_tile

    def kv_step(i, carry):
        m_i, l_i, acc = carry
        off = pl.multiple_of(i * kv_tile, kv_tile)
        kt = k_sc[:, pl.ds(off, kv_tile), :]                          # (BH, tk, hd)
        vt = v_sc[:, pl.ds(off, kv_tile), :]
        s = jnp.einsum("bld,bmd->blm", q, kt,
                       preferred_element_type=jnp.float32)            # (BH, L, tk)
        m_new = jnp.maximum(m_i, jnp.max(s, axis=-1, keepdims=True))
        alpha = jnp.exp(m_i - m_new)
        p = jnp.exp(s - m_new)                                         # single live prob tile
        l_new = alpha * l_i + jnp.sum(p, axis=-1, keepdims=True)
        acc_new = alpha * acc + jnp.einsum("blm,bmd->bld", p.astype(jnp.bfloat16), vt,
                                           preferred_element_type=jnp.float32)
        return m_new, l_new, acc_new

    m0 = jnp.full((bh, seq_len, 1), -jnp.inf, jnp.float32)
    l0 = jnp.zeros((bh, seq_len, 1), jnp.float32)
    a0 = jnp.zeros((bh, seq_len, head_dim), jnp.float32)
    _, l_i, acc = lax.fori_loop(0, n_kv, kv_step, (m0, l0, a0), unroll=n_kv <= 4)

    ctx = acc * pl.reciprocal(l_i, approx=True)                        # deferred norm (EUP)
    ctx = jnp.transpose(ctx.reshape(tb, n_head, seq_len, head_dim), (0, 2, 1, 3))
    ctx = ctx.reshape(m_rows, d_model)
    attn = jnp.dot(ctx.astype(jnp.bfloat16), w_o_ref[...],
                   preferred_element_type=jnp.float32) + b_o_ref[...]

    out_ref[...] = x + attn                                            # residual 1 (staged)

    # ---- ln_2 + MLP (c_fc -> QuickGELU -> c_proj), tiled over rows ----
    n_row = m_rows // mlp_row_tile

    def mlp_step(r, c):
        ro = pl.multiple_of(r * mlp_row_tile, mlp_row_tile)
        x1 = out_ref[pl.ds(ro, mlp_row_tile), :]
        h2 = _layernorm(x1, ln2_g_ref[...], ln2_b_ref[...])
        f = jnp.dot(h2.astype(jnp.bfloat16), w_fc_ref[...],
                    preferred_element_type=jnp.float32) + b_fc_ref[...]   # (tm, 4D)
        f = f * jax.nn.sigmoid(1.702 * f)                                 # QuickGELU
        f = jnp.dot(f.astype(jnp.bfloat16), w_pr_ref[...],
                    preferred_element_type=jnp.float32) + b_pr_ref[...]   # (tm, D)
        out_ref[pl.ds(ro, mlp_row_tile), :] = x1 + f                      # residual 2
        return c

    lax.fori_loop(0, n_row, mlp_step, 0, unroll=n_row <= 4)


# --------------------------------------------------------------------------- wrappers
def _build_call(batch, seq_len, d_model, n_head, params):
    tb = _pick_batch_tile(batch, seq_len)
    m_rows = tb * seq_len
    kv_tile = _largest_tile(seq_len, (512, 256, 128))
    mlp_row_tile = _largest_tile(m_rows, (512, 256, 128))
    head_dim = d_model // n_head

    kernel = functools.partial(
        _block_kernel, tb=tb, seq_len=seq_len, d_model=d_model, n_head=n_head,
        kv_tile=kv_tile, mlp_row_tile=mlp_row_tile)

    grid_spec = pltpu.PrefetchScalarGridSpec(
        num_scalar_prefetch=0,
        grid=(batch // tb,),
        in_specs=[pl.BlockSpec((m_rows, d_model), lambda g: (g, 0))]
                 + [_param_block_spec(p.shape) for p in params],
        out_specs=pl.BlockSpec((m_rows, d_model), lambda g: (g, 0)),
        scratch_shapes=[
            pltpu.VMEM((tb * n_head, seq_len, head_dim), jnp.bfloat16),   # K heads
            pltpu.VMEM((tb * n_head, seq_len, head_dim), jnp.bfloat16),   # V heads
        ],
    )
    return pl.pallas_call(
        kernel,
        out_shape=jax.ShapeDtypeStruct((batch * seq_len, d_model), jnp.float32),
        grid_spec=grid_spec,
        compiler_params=pltpu.CompilerParams(
            dimension_semantics=("parallel",),
            vmem_limit_bytes=_vmem_limit_bytes(),
        ),
    )


def residual_attention_block_bld(xb, params, n_head):
    """Batch-first entry: xb (B, L, D) f32 -> (B, L, D) f32."""
    B, L, D = xb.shape
    call = _build_call(B, L, D, n_head, params)
    out = call(xb.reshape(B * L, D), *params)
    return out.reshape(B, L, D)


def residual_attention_block(x, params, n_head):
    """Module-spec entry: x (L, N*B, D) f32 -> (L, N*B, D) f32 (PyTorch seq-first)."""
    out = residual_attention_block_bld(jnp.transpose(x, (1, 0, 2)), params, n_head)
    return jnp.transpose(out, (1, 0, 2))


# --------------------------------------------------------------------------- params / ref
def make_params(key, d_model):
    """Deterministic synthetic parameters (shapes match the PyTorch module).
    Weight matrices are stored bf16 (MXU-native, halves HBM->VMEM DMA);
    biases and LayerNorm affine parameters stay f32."""
    ks = jax.random.split(key, 6)
    s = 0.02
    wdt = jnp.bfloat16
    return (
        jnp.ones((1, d_model), jnp.float32),                                              # ln_1 gamma
        jnp.zeros((1, d_model), jnp.float32),                                             # ln_1 beta
        (s * jax.random.normal(ks[0], (d_model, 3 * d_model), jnp.float32)).astype(wdt),  # in_proj W
        s * jax.random.normal(ks[1], (1, 3 * d_model), jnp.float32),                      # in_proj b
        (s * jax.random.normal(ks[2], (d_model, d_model), jnp.float32)).astype(wdt),      # out_proj W
        jnp.zeros((1, d_model), jnp.float32),                                             # out_proj b
        jnp.ones((1, d_model), jnp.float32),                                              # ln_2 gamma
        jnp.zeros((1, d_model), jnp.float32),                                             # ln_2 beta
        (s * jax.random.normal(ks[3], (d_model, 4 * d_model), jnp.float32)).astype(wdt),  # c_fc W
        s * jax.random.normal(ks[4], (1, 4 * d_model), jnp.float32),                      # c_fc b
        (s * jax.random.normal(ks[5], (4 * d_model, d_model), jnp.float32)).astype(wdt),  # c_proj W
        jnp.zeros((1, d_model), jnp.float32),                                             # c_proj b
    )


def reference_block(x, params, n_head):
    """Pure-JAX fp32 reference (mirrors the PyTorch forward) for verification."""
    (ln1_g, ln1_b, w_qkv, b_qkv, w_o, b_o,
     ln2_g, ln2_b, w_fc, b_fc, w_pr, b_pr) = [jnp.asarray(p, jnp.float32) for p in params]
    L, B, D = x.shape
    hd = D // n_head
    scale = 1.0 / math.sqrt(hd)

    def ln(v, g, b):
        mu = jnp.mean(v, axis=-1, keepdims=True)
        var = jnp.mean((v - mu) ** 2, axis=-1, keepdims=True)
        return (v - mu) / jnp.sqrt(var + LN_EPS) * g[0] + b[0]

    h = ln(x, ln1_g, ln1_b)
    qkv = jnp.einsum("lbd,de->lbe", h, w_qkv) + b_qkv[0]
    q, k, v = jnp.split(qkv, 3, axis=-1)
    q = q.reshape(L, B, n_head, hd) * scale
    k = k.reshape(L, B, n_head, hd)
    v = v.reshape(L, B, n_head, hd)
    s = jnp.einsum("lbhe,mbhe->bhlm", q, k)
    p = jax.nn.softmax(s, axis=-1)
    a = jnp.einsum("bhlm,mbhe->lbhe", p, v).reshape(L, B, D)
    a = jnp.einsum("lbd,de->lbe", a, w_o) + b_o[0]
    x1 = x + a
    h2 = ln(x1, ln2_g, ln2_b)
    f = jnp.einsum("lbd,de->lbe", h2, w_fc) + b_fc[0]
    f = f * jax.nn.sigmoid(1.702 * f)
    f = jnp.einsum("lbd,de->lbe", f, w_pr) + b_pr[0]
    return x1 + f


# --------------------------------------------------------------------------- test
if __name__ == "__main__":
    L, NB, D, H = 8, 2, 32, 4   # seq, N*B, d_model, n_head

    key = jax.random.PRNGKey(0)
    kx, kp = jax.random.split(key)
    x = jax.random.normal(kx, (L, NB, D), jnp.float32)
    params = make_params(kp, D)

    out = residual_attention_block(x, params, H)
    out = jax.block_until_ready(out)

    ref = reference_block(x, params, H)
    assert out.shape == (L, NB, D)
    # bf16 MXU operands + approx reciprocal -> relaxed (but still tight) tolerance.
    np.testing.assert_allclose(np.asarray(out), np.asarray(ref), atol=2e-2, rtol=2e-2)

    print("KERNEL_OK")
</pallas_src>

<mosaic_0001>
module attributes {stable_mosaic.version = 11 : i64} {
  func.func @_block_kernel(%arg0: i32, %arg1: memref<16x32xf32, #tpu.memory_space<vmem>>, %arg2: memref<1x32xf32, #tpu.memory_space<vmem>>, %arg3: memref<1x32xf32, #tpu.memory_space<vmem>>, %arg4: memref<32x96xbf16, #tpu.memory_space<vmem>>, %arg5: memref<1x96xf32, #tpu.memory_space<vmem>>, %arg6: memref<32x32xbf16, #tpu.memory_space<vmem>>, %arg7: memref<1x32xf32, #tpu.memory_space<vmem>>, %arg8: memref<1x32xf32, #tpu.memory_space<vmem>>, %arg9: memref<1x32xf32, #tpu.memory_space<vmem>>, %arg10: memref<32x128xbf16, #tpu.memory_space<vmem>>, %arg11: memref<1x128xf32, #tpu.memory_space<vmem>>, %arg12: memref<128x32xbf16, #tpu.memory_space<vmem>>, %arg13: memref<1x32xf32, #tpu.memory_space<vmem>>, %arg14: memref<16x32xf32, #tpu.memory_space<vmem>>, %arg15: memref<8x8x8xbf16, #tpu.memory_space<vmem>>, %arg16: memref<8x8x8xbf16, #tpu.memory_space<vmem>>) attributes {dimension_semantics = [#tpu.dimension_semantics<parallel>], iteration_bounds = array<i64: 1>, scalar_prefetch = 0 : i64, scratch_operands = 2 : i64, tpu.core_type = #tpu.core_type<tc>, window_params = [{transform_indices = @transform_0, window_bounds = array<i64: 16, 32>}, {pipeline_mode = #tpu.pipeline_mode<synchronous>, transform_indices = @transform_1, window_bounds = array<i64: 1, 32>}, {pipeline_mode = #tpu.pipeline_mode<synchronous>, transform_indices = @transform_2, window_bounds = array<i64: 1, 32>}, {pipeline_mode = #tpu.pipeline_mode<synchronous>, transform_indices = @transform_3, window_bounds = array<i64: 32, 96>}, {pipeline_mode = #tpu.pipeline_mode<synchronous>, transform_indices = @transform_4, window_bounds = array<i64: 1, 96>}, {pipeline_mode = #tpu.pipeline_mode<synchronous>, transform_indices = @transform_5, window_bounds = array<i64: 32, 32>}, {pipeline_mode = #tpu.pipeline_mode<synchronous>, transform_indices = @transform_6, window_bounds = array<i64: 1, 32>}, {pipeline_mode = #tpu.pipeline_mode<synchronous>, transform_indices = @transform_7, window_bounds = array<i64: 1, 32>}, {pipeline_mode = #tpu.pipeline_mode<synchronous>, transform_indices = @transform_8, window_bounds = array<i64: 1, 32>}, {pipeline_mode = #tpu.pipeline_mode<synchronous>, transform_indices = @transform_9, window_bounds = array<i64: 32, 128>}, {pipeline_mode = #tpu.pipeline_mode<synchronous>, transform_indices = @transform_10, window_bounds = array<i64: 1, 128>}, {pipeline_mode = #tpu.pipeline_mode<synchronous>, transform_indices = @transform_11, window_bounds = array<i64: 128, 32>}, {pipeline_mode = #tpu.pipeline_mode<synchronous>, transform_indices = @transform_12, window_bounds = array<i64: 1, 32>}, {transform_indices = @transform_13, window_bounds = array<i64: 16, 32>}]} {
    %c0 = arith.constant 0 : index
    %c0_0 = arith.constant 0 : index
    %0 = vector.load %arg1[%c0, %c0_0] : memref<16x32xf32, #tpu.memory_space<vmem>>, vector<16x32xf32>
    %c0_1 = arith.constant 0 : index
    %c0_2 = arith.constant 0 : index
    %1 = vector.load %arg2[%c0_1, %c0_2] : memref<1x32xf32, #tpu.memory_space<vmem>>, vector<1x32xf32>
    %c0_3 = arith.constant 0 : index
    %c0_4 = arith.constant 0 : index
    %2 = vector.load %arg3[%c0_3, %c0_4] : memref<1x32xf32, #tpu.memory_space<vmem>>, vector<1x32xf32>
    %cst = arith.constant dense<0.000000e+00> : vector<16xf32>
    %3 = vector.multi_reduction <add>, %0, %cst [1] : vector<16x32xf32> to vector<16xf32>
    %4 = vector.shape_cast %3 : vector<16xf32> to vector<16x1xf32>
    %cst_5 = arith.constant 3.200000e+01 : f32
    %5 = vector.broadcast %cst_5 : f32 to vector<16x1xf32>
    %6 = arith.divf %4, %5 : vector<16x1xf32>
    %7 = vector.broadcast %6 : vector<16x1xf32> to vector<16x32xf32>
    %8 = arith.subf %0, %7 : vector<16x32xf32>
    %9 = arith.mulf %8, %8 : vector<16x32xf32>
    %cst_6 = arith.constant dense<0.000000e+00> : vector<16xf32>
    %10 = vector.multi_reduction <add>, %9, %cst_6 [1] : vector<16x32xf32> to vector<16xf32>
    %11 = vector.shape_cast %10 : vector<16xf32> to vector<16x1xf32>
    %cst_7 = arith.constant 3.200000e+01 : f32
    %12 = vector.broadcast %cst_7 : f32 to vector<16x1xf32>
    %13 = arith.divf %11, %12 : vector<16x1xf32>
    %14 = vector.broadcast %6 : vector<16x1xf32> to vector<16x32xf32>
    %15 = arith.subf %0, %14 : vector<16x32xf32>
    %cst_8 = arith.constant 9.99999974E-6 : f32
    %16 = vector.broadcast %cst_8 : f32 to vector<16x1xf32>
    %17 = arith.addf %13, %16 : vector<16x1xf32>
    %18 = math.rsqrt %17 : vector<16x1xf32>
    %19 = vector.broadcast %18 : vector<16x1xf32> to vector<16x32xf32>
    %20 = arith.mulf %15, %19 : vector<16x32xf32>
    %21 = vector.broadcast %1 : vector<1x32xf32> to vector<16x32xf32>
    %22 = arith.mulf %20, %21 : vector<16x32xf32>
    %23 = vector.broadcast %2 : vector<1x32xf32> to vector<16x32xf32>
    %24 = arith.addf %22, %23 : vector<16x32xf32>
    %25 = arith.truncf %24 : vector<16x32xf32> to vector<16x32xbf16>
    %c0_9 = arith.constant 0 : index
    %c0_10 = arith.constant 0 : index
    %26 = vector.load %arg4[%c0_9, %c0_10] : memref<32x96xbf16, #tpu.memory_space<vmem>>, vector<32x96xbf16>
    %cst_11 = arith.constant dense<0.000000e+00> : vector<16x96xf32>
    %27 = tpu.matmul %25, %26, %cst_11 {dimension_numbers = #tpu.dot_dimension_numbers<[1], [0], [0], [1], [0, 0, 1, 1], [], []>} : vector<16x32xbf16>, vector<32x96xbf16>, vector<16x96xf32> -> vector<16x96xf32>
    %c0_12 = arith.constant 0 : index
    %c0_13 = arith.constant 0 : index
    %28 = vector.load %arg5[%c0_12, %c0_13] : memref<1x96xf32, #tpu.memory_space<vmem>>, vector<1x96xf32>
    %29 = vector.broadcast %28 : vector<1x96xf32> to vector<16x96xf32>
    %30 = arith.addf %27, %29 : vector<16x96xf32>
    %31 = vector.extract_strided_slice %30 {offsets = [0, 0], sizes = [16, 32], strides = [1, 1]} : vector<16x96xf32> to vector<16x32xf32>
    %cst_14 = arith.constant 0.353553385 : f32
    %32 = vector.broadcast %cst_14 : f32 to vector<16x32xf32>
    %33 = arith.mulf %31, %32 : vector<16x32xf32>
    %34 = vector.shape_cast %33 : vector<16x32xf32> to vector<2x8x4x8xf32>
    %35 = tpu.transpose %34, [0, 2, 1, 3] : vector<2x8x4x8xf32> -> vector<2x4x8x8xf32>
    %36 = vector.shape_cast %35 : vector<2x4x8x8xf32> to vector<8x8x8xf32>
    %37 = arith.truncf %36 : vector<8x8x8xf32> to vector<8x8x8xbf16>
    %38 = vector.extract_strided_slice %30 {offsets = [0, 32], sizes = [16, 32], strides = [1, 1]} : vector<16x96xf32> to vector<16x32xf32>
    %39 = vector.shape_cast %38 : vector<16x32xf32> to vector<2x8x4x8xf32>
    %40 = tpu.transpose %39, [0, 2, 1, 3] : vector<2x8x4x8xf32> -> vector<2x4x8x8xf32>
    %41 = vector.shape_cast %40 : vector<2x4x8x8xf32> to vector<8x8x8xf32>
    %42 = arith.truncf %41 : vector<8x8x8xf32> to vector<8x8x8xbf16>
    %c0_15 = arith.constant 0 : index
    %c0_16 = arith.constant 0 : index
    %c0_17 = arith.constant 0 : index
    %43 = vector.load %arg15[%c0_15, %c0_16, %c0_17] : memref<8x8x8xbf16, #tpu.memory_space<vmem>>, vector<8x8x8xbf16>
    tpu.vector_store %arg15[%c0_15, %c0_16, %c0_17], %42 {strides = array<i32>} : memref<8x8x8xbf16, #tpu.memory_space<vmem>>, vector<8x8x8xbf16>,
    %44 = vector.extract_strided_slice %30 {offsets = [0, 64], sizes = [16, 32], strides = [1, 1]} : vector<16x96xf32> to vector<16x32xf32>
    %45 = vector.shape_cast %44 : vector<16x32xf32> to vector<2x8x4x8xf32>
    %46 = tpu.transpose %45, [0, 2, 1, 3] : vector<2x8x4x8xf32> -> vector<2x4x8x8xf32>
    %47 = vector.shape_cast %46 : vector<2x4x8x8xf32> to vector<8x8x8xf32>
    %48 = arith.truncf %47 : vector<8x8x8xf32> to vector<8x8x8xbf16>
    %c0_18 = arith.constant 0 : index
    %c0_19 = arith.constant 0 : index
    %c0_20 = arith.constant 0 : index
    %49 = vector.load %arg16[%c0_18, %c0_19, %c0_20] : memref<8x8x8xbf16, #tpu.memory_space<vmem>>, vector<8x8x8xbf16>
    tpu.vector_store %arg16[%c0_18, %c0_19, %c0_20], %48 {strides = array<i32>} : memref<8x8x8xbf16, #tpu.memory_space<vmem>>, vector<8x8x8xbf16>,
    %cst_21 = arith.constant 0xFF800000 : f32
    %50 = vector.broadcast %cst_21 : f32 to vector<8x8x1xf32>
    %cst_22 = arith.constant 0.000000e+00 : f32
    %51 = vector.broadcast %cst_22 : f32 to vector<8x8x1xf32>
    %cst_23 = arith.constant 0.000000e+00 : f32
    %52 = vector.broadcast %cst_23 : f32 to vector<8x8x8xf32>
    %c0_i32 = arith.constant 0 : i32
    %c8_i32 = arith.constant 8 : i32
    %53 = arith.muli %c0_i32, %c8_i32 : i32
    %54 = tpu.assume_multiple %53, 8 : i32
    %c0_24 = arith.constant 0 : index
    %55 = arith.index_cast %54 : i32 to index
    %c0_25 = arith.constant 0 : index
    %56 = vector.load %arg15[%c0_24, %55, %c0_25] : memref<8x8x8xbf16, #tpu.memory_space<vmem>>, vector<8x8x8xbf16>
    %c0_26 = arith.constant 0 : index
    %57 = arith.index_cast %54 : i32 to index
    %c0_27 = arith.constant 0 : index
    %58 = vector.load %arg16[%c0_26, %57, %c0_27] : memref<8x8x8xbf16, #tpu.memory_space<vmem>>, vector<8x8x8xbf16>
    "tpu.trace_start"() <{level = 10 : i32, message = "bld,bmd->blm"}> : () -> ()
    %cst_28 = arith.constant dense<0.000000e+00> : vector<8x8x8xf32>
    %59 = tpu.matmul %37, %56, %cst_28 {dimension_numbers = #tpu.dot_dimension_numbers<[2], [2], [1], [1], [0, 0, 0, 1, 1, 1], [0], [0]>} : vector<8x8x8xbf16>, vector<8x8x8xbf16>, vector<8x8x8xf32> -> vector<8x8x8xf32>
    "tpu.trace_stop"() : () -> ()
    %cst_29 = arith.constant dense<0xFF800000> : vector<8x8xf32>
    %60 = vector.multi_reduction <maximumf>, %59, %cst_29 [2] : vector<8x8x8xf32> to vector<8x8xf32>
    %61 = vector.shape_cast %60 : vector<8x8xf32> to vector<8x8x1xf32>
    %62 = arith.maximumf %50, %61 : vector<8x8x1xf32>
    %63 = arith.subf %50, %62 : vector<8x8x1xf32>
    %64 = math.exp %63 : vector<8x8x1xf32>
    %65 = vector.broadcast %62 : vector<8x8x1xf32> to vector<8x8x8xf32>
    %66 = arith.subf %59, %65 : vector<8x8x8xf32>
    %67 = math.exp %66 : vector<8x8x8xf32>
    %68 = arith.mulf %64, %51 : vector<8x8x1xf32>
    %cst_30 = arith.constant dense<0.000000e+00> : vector<8x8xf32>
    %69 = vector.multi_reduction <add>, %67, %cst_30 [2] : vector<8x8x8xf32> to vector<8x8xf32>
    %70 = vector.shape_cast %69 : vector<8x8xf32> to vector<8x8x1xf32>
    %71 = arith.addf %68, %70 : vector<8x8x1xf32>
    %72 = vector.broadcast %64 : vector<8x8x1xf32> to vector<8x8x8xf32>
    %73 = arith.mulf %72, %52 : vector<8x8x8xf32>
    %74 = arith.truncf %67 : vector<8x8x8xf32> to vector<8x8x8xbf16>
    "tpu.trace_start"() <{level = 10 : i32, message = "blm,bmd->bld"}> : () -> ()
    %cst_31 = arith.constant dense<0.000000e+00> : vector<8x8x8xf32>
    %75 = tpu.matmul %74, %58, %cst_31 {dimension_numbers = #tpu.dot_dimension_numbers<[2], [1], [1], [2], [0, 0, 0, 1, 1, 2], [0], [0]>} : vector<8x8x8xbf16>, vector<8x8x8xbf16>, vector<8x8x8xf32> -> vector<8x8x8xf32>
    "tpu.trace_stop"() : () -> ()
    %76 = arith.addf %73, %75 : vector<8x8x8xf32>
    %c1_i32 = arith.constant 1 : i32
    %77 = tpu.reciprocal %71 {approx = true} : vector<8x8x1xf32> -> vector<8x8x1xf32>
    %78 = vector.broadcast %77 : vector<8x8x1xf32> to vector<8x8x8xf32>
    %79 = arith.mulf %76, %78 : vector<8x8x8xf32>
    %80 = vector.shape_cast %79 : vector<8x8x8xf32> to vector<2x4x8x8xf32>
    %81 = tpu.transpose %80, [0, 2, 1, 3] : vector<2x4x8x8xf32> -> vector<2x8x4x8xf32>
    %82 = vector.shape_cast %81 : vector<2x8x4x8xf32> to vector<16x32xf32>
    %83 = arith.truncf %82 : vector<16x32xf32> to vector<16x32xbf16>
    %c0_32 = arith.constant 0 : index
    %c0_33 = arith.constant 0 : index
    %84 = vector.load %arg6[%c0_32, %c0_33] : memref<32x32xbf16, #tpu.memory_space<vmem>>, vector<32x32xbf16>
    %cst_34 = arith.constant dense<0.000000e+00> : vector<16x32xf32>
    %85 = tpu.matmul %83, %84, %cst_34 {dimension_numbers = #tpu.dot_dimension_numbers<[1], [0], [0], [1], [0, 0, 1, 1], [], []>} : vector<16x32xbf16>, vector<32x32xbf16>, vector<16x32xf32> -> vector<16x32xf32>
    %c0_35 = arith.constant 0 : index
    %c0_36 = arith.constant 0 : index
    %86 = vector.load %arg7[%c0_35, %c0_36] : memref<1x32xf32, #tpu.memory_space<vmem>>, vector<1x32xf32>
    %87 = vector.broadcast %86 : vector<1x32xf32> to vector<16x32xf32>
    %88 = arith.addf %85, %87 : vector<16x32xf32>
    %89 = arith.addf %0, %88 : vector<16x32xf32>
    %c0_37 = arith.constant 0 : index
    %c0_38 = arith.constant 0 : index
    %90 = vector.load %arg14[%c0_37, %c0_38] : memref<16x32xf32, #tpu.memory_space<vmem>>, vector<16x32xf32>
    tpu.vector_store %arg14[%c0_37, %c0_38], %89 {strides = array<i32>} : memref<16x32xf32, #tpu.memory_space<vmem>>, vector<16x32xf32>,
    %c0_i32_39 = arith.constant 0 : i32
    %c16_i32 = arith.constant 16 : i32
    %91 = arith.muli %c0_i32_39, %c16_i32 : i32
    %92 = tpu.assume_multiple %91, 16 : i32
    %93 = arith.index_cast %92 : i32 to index
    %c0_40 = arith.constant 0 : index
    %94 = vector.load %arg14[%93, %c0_40] : memref<16x32xf32, #tpu.memory_space<vmem>>, vector<16x32xf32>
    %c0_41 = arith.constant 0 : index
    %c0_42 = arith.constant 0 : index
    %95 = vector.load %arg8[%c0_41, %c0_42] : memref<1x32xf32, #tpu.memory_space<vmem>>, vector<1x32xf32>
    %c0_43 = arith.constant 0 : index
    %c0_44 = arith.constant 0 : index
    %96 = vector.load %arg9[%c0_43, %c0_44] : memref<1x32xf32, #tpu.memory_space<vmem>>, vector<1x32xf32>
    %cst_45 = arith.constant dense<0.000000e+00> : vector<16xf32>
    %97 = vector.multi_reduction <add>, %94, %cst_45 [1] : vector<16x32xf32> to vector<16xf32>
    %98 = vector.shape_cast %97 : vector<16xf32> to vector<16x1xf32>
    %cst_46 = arith.constant 3.200000e+01 : f32
    %99 = vector.broadcast %cst_46 : f32 to vector<16x1xf32>
    %100 = arith.divf %98, %99 : vector<16x1xf32>
    %101 = vector.broadcast %100 : vector<16x1xf32> to vector<16x32xf32>
    %102 = arith.subf %94, %101 : vector<16x32xf32>
    %103 = arith.mulf %102, %102 : vector<16x32xf32>
    %cst_47 = arith.constant dense<0.000000e+00> : vector<16xf32>
    %104 = vector.multi_reduction <add>, %103, %cst_47 [1] : vector<16x32xf32> to vector<16xf32>
    %105 = vector.shape_cast %104 : vector<16xf32> to vector<16x1xf32>
    %cst_48 = arith.constant 3.200000e+01 : f32
    %106 = vector.broadcast %cst_48 : f32 to vector<16x1xf32>
    %107 = arith.divf %105, %106 : vector<16x1xf32>
    %108 = vector.broadcast %100 : vector<16x1xf32> to vector<16x32xf32>
    %109 = arith.subf %94, %108 : vector<16x32xf32>
    %cst_49 = arith.constant 9.99999974E-6 : f32
    %110 = vector.broadcast %cst_49 : f32 to vector<16x1xf32>
    %111 = arith.addf %107, %110 : vector<16x1xf32>
    %112 = math.rsqrt %111 : vector<16x1xf32>
    %113 = vector.broadcast %112 : vector<16x1xf32> to vector<16x32xf32>
    %114 = arith.mulf %109, %113 : vector<16x32xf32>
    %115 = vector.broadcast %95 : vector<1x32xf32> to vector<16x32xf32>
    %116 = arith.mulf %114, %115 : vector<16x32xf32>
    %117 = vector.broadcast %96 : vector<1x32xf32> to vector<16x32xf32>
    %118 = arith.addf %116, %117 : vector<16x32xf32>
    %119 = arith.truncf %118 : vector<16x32xf32> to vector<16x32xbf16>
    %c0_50 = arith.constant 0 : index
    %c0_51 = arith.constant 0 : index
    %120 = vector.load %arg10[%c0_50, %c0_51] : memref<32x128xbf16, #tpu.memory_space<vmem>>, vector<32x128xbf16>
    %cst_52 = arith.constant dense<0.000000e+00> : vector<16x128xf32>
    %121 = tpu.matmul %119, %120, %cst_52 {dimension_numbers = #tpu.dot_dimension_numbers<[1], [0], [0], [1], [0, 0, 1, 1], [], []>} : vector<16x32xbf16>, vector<32x128xbf16>, vector<16x128xf32> -> vector<16x128xf32>
    %c0_53 = arith.constant 0 : index
    %c0_54 = arith.constant 0 : index
    %122 = vector.load %arg11[%c0_53, %c0_54] : memref<1x128xf32, #tpu.memory_space<vmem>>, vector<1x128xf32>
    %123 = vector.broadcast %122 : vector<1x128xf32> to vector<16x128xf32>
    %124 = arith.addf %121, %123 : vector<16x128xf32>
    %cst_55 = arith.constant 1.702000e+00 : f32
    %125 = vector.broadcast %cst_55 : f32 to vector<16x128xf32>
    %126 = arith.mulf %125, %124 : vector<16x128xf32>
    %127 = arith.negf %126 : vector<16x128xf32>
    %128 = math.exp %127 : vector<16x128xf32>
    %cst_56 = arith.constant 1.000000e+00 : f32
    %129 = vector.broadcast %cst_56 : f32 to vector<16x128xf32>
    %130 = arith.addf %129, %128 : vector<16x128xf32>
    %131 = arith.divf %129, %130 : vector<16x128xf32>
    %132 = arith.mulf %124, %131 : vector<16x128xf32>
    %133 = arith.truncf %132 : vector<16x128xf32> to vector<16x128xbf16>
    %c0_57 = arith.constant 0 : index
    %c0_58 = arith.constant 0 : index
    %134 = vector.load %arg12[%c0_57, %c0_58] : memref<128x32xbf16, #tpu.memory_space<vmem>>, vector<128x32xbf16>
    %cst_59 = arith.constant dense<0.000000e+00> : vector<16x32xf32>
    %135 = tpu.matmul %133, %134, %cst_59 {dimension_numbers = #tpu.dot_dimension_numbers<[1], [0], [0], [1], [0, 0, 1, 1], [], []>} : vector<16x128xbf16>, vector<128x32xbf16>, vector<16x32xf32> -> vector<16x32xf32>
    %c0_60 = arith.constant 0 : index
    %c0_61 = arith.constant 0 : index
    %136 = vector.load %arg13[%c0_60, %c0_61] : memref<1x32xf32, #tpu.memory_space<vmem>>, vector<1x32xf32>
    %137 = vector.broadcast %136 : vector<1x32xf32> to vector<16x32xf32>
    %138 = arith.addf %135, %137 : vector<16x32xf32>
    %139 = arith.addf %94, %138 : vector<16x32xf32>
    %140 = arith.index_cast %92 : i32 to index
    %c0_62 = arith.constant 0 : index
    %141 = vector.load %arg14[%140, %c0_62] : memref<16x32xf32, #tpu.memory_space<vmem>>, vector<16x32xf32>
    tpu.vector_store %arg14[%140, %c0_62], %139 {strides = array<i32>} : memref<16x32xf32, #tpu.memory_space<vmem>>, vector<16x32xf32>,
    %c1_i32_63 = arith.constant 1 : i32
    return
  }
  func.func @transform_0(%arg0: i32) -> (i32, i32) {
    %c0_i32 = arith.constant 0 : i32
    %c0_i32_0 = arith.constant 0 : i32
    return %arg0, %c0_i32 : i32, i32
  }
  func.func @transform_1(%arg0: i32) -> (i32, i32) {
    %c0_i32 = arith.constant 0 : i32
    %c0_i32_0 = arith.constant 0 : i32
    %c0_i32_1 = arith.constant 0 : i32
    return %c0_i32, %c0_i32_0 : i32, i32
  }
  func.func @transform_2(%arg0: i32) -> (i32, i32) {
    %c0_i32 = arith.constant 0 : i32
    %c0_i32_0 = arith.constant 0 : i32
    %c0_i32_1 = arith.constant 0 : i32
    return %c0_i32, %c0_i32_0 : i32, i32
  }
  func.func @transform_3(%arg0: i32) -> (i32, i32) {
    %c0_i32 = arith.constant 0 : i32
    %c0_i32_0 = arith.constant 0 : i32
    %c0_i32_1 = arith.constant 0 : i32
    return %c0_i32, %c0_i32_0 : i32, i32
  }
  func.func @transform_4(%arg0: i32) -> (i32, i32) {
    %c0_i32 = arith.constant 0 : i32
    %c0_i32_0 = arith.constant 0 : i32
    %c0_i32_1 = arith.constant 0 : i32
    return %c0_i32, %c0_i32_0 : i32, i32
  }
  func.func @transform_5(%arg0: i32) -> (i32, i32) {
    %c0_i32 = arith.constant 0 : i32
    %c0_i32_0 = arith.constant 0 : i32
    %c0_i32_1 = arith.constant 0 : i32
    return %c0_i32, %c0_i32_0 : i32, i32
  }
  func.func @transform_6(%arg0: i32) -> (i32, i32) {
    %c0_i32 = arith.constant 0 : i32
    %c0_i32_0 = arith.constant 0 : i32
    %c0_i32_1 = arith.constant 0 : i32
    return %c0_i32, %c0_i32_0 : i32, i32
  }
  func.func @transform_7(%arg0: i32) -> (i32, i32) {
    %c0_i32 = arith.constant 0 : i32
    %c0_i32_0 = arith.constant 0 : i32
    %c0_i32_1 = arith.constant 0 : i32
    return %c0_i32, %c0_i32_0 : i32, i32
  }
  func.func @transform_8(%arg0: i32) -> (i32, i32) {
    %c0_i32 = arith.constant 0 : i32
    %c0_i32_0 = arith.constant 0 : i32
    %c0_i32_1 = arith.constant 0 : i32
    return %c0_i32, %c0_i32_0 : i32, i32
  }
  func.func @transform_9(%arg0: i32) -> (i32, i32) {
    %c0_i32 = arith.constant 0 : i32
    %c0_i32_0 = arith.constant 0 : i32
    %c0_i32_1 = arith.constant 0 : i32
    return %c0_i32, %c0_i32_0 : i32, i32
  }
  func.func @transform_10(%arg0: i32) -> (i32, i32) {
    %c0_i32 = arith.constant 0 : i32
    %c0_i32_0 = arith.constant 0 : i32
    %c0_i32_1 = arith.constant 0 : i32
    return %c0_i32, %c0_i32_0 : i32, i32
  }
  func.func @transform_11(%arg0: i32) -> (i32, i32) {
    %c0_i32 = arith.constant 0 : i32
    %c0_i32_0 = arith.constant 0 : i32
    %c0_i32_1 = arith.constant 0 : i32
    return %c0_i32, %c0_i32_0 : i32, i32
  }
  func.func @transform_12(%arg0: i32) -> (i32, i32) {
    %c0_i32 = arith.constant 0 : i32
    %c0_i32_0 = arith.constant 0 : i32
    %c0_i32_1 = arith.constant 0 : i32
    return %c0_i32, %c0_i32_0 : i32, i32
  }
  func.func @transform_13(%arg0: i32) -> (i32, i32) {
    %c0_i32 = arith.constant 0 : i32
    %c0_i32_0 = arith.constant 0 : i32
    return %arg0, %c0_i32 : i32, i32
  }
}

</mosaic_0001>

<llo_original>
// kernel: tpu_custom_call.1
$region0: #{tpu_custom_call.1}
  #allocation0 [shape = 'u32[]', space=smem, size = 0x4, offset = 0x4, fixed_abs, tag = 'smem constant byte address 0x4 - core index']
  #allocation1 [shape = 'u32[144,128]{1,0:T(1,128)}', space=vmem, size = 0x12000, scoped, tag = 'internal scratch']
  #allocation2 [shape = 'bf16[8,8,8]{2,1,0:T(8,128)(2,1)}', space=vmem, size = 0x4000, scoped, tag = 'scratch operand']
  #allocation3 [shape = 'bf16[8,8,8]{2,1,0:T(8,128)(2,1)}', space=vmem, size = 0x4000, scoped, tag = 'scratch operand']
  %s0 = inlined_call_operand.vmem [shape: f32[16,32], index: 0, kind: input, shape index: {}]
  %s1 = inlined_call_operand.vmem [shape: f32[1,32], index: 1, kind: input, shape index: {}]
  %s2 = inlined_call_operand.vmem [shape: f32[1,32], index: 2, kind: input, shape index: {}]
  %s3 = inlined_call_operand.vmem [shape: bf16[32,96], index: 3, kind: input, shape index: {}]
  %s4 = inlined_call_operand.vmem [shape: f32[1,96], index: 4, kind: input, shape index: {}]
  %s5 = inlined_call_operand.vmem [shape: bf16[32,32], index: 5, kind: input, shape index: {}]
  %s6 = inlined_call_operand.vmem [shape: f32[1,32], index: 6, kind: input, shape index: {}]
  %s7 = inlined_call_operand.vmem [shape: f32[1,32], index: 7, kind: input, shape index: {}]
  %s8 = inlined_call_operand.vmem [shape: f32[1,32], index: 8, kind: input, shape index: {}]
  %s9 = inlined_call_operand.vmem [shape: bf16[32,128], index: 9, kind: input, shape index: {}]
  %s10 = inlined_call_operand.vmem [shape: f32[1,128], index: 10, kind: input, shape index: {}]
  %s11 = inlined_call_operand.vmem [shape: bf16[128,32], index: 11, kind: input, shape index: {}]
  %s12 = inlined_call_operand.vmem [shape: f32[1,32], index: 12, kind: input, shape index: {}]
  %s13 = inlined_call_operand.hbm [shape: f32[16,32], index: 13, kind: output, shape index: {}]
  %s14 = sld [smem:[#allocation0]]
  $region62: #{tpu_custom_call.1} parent=0
    _
  %s16 = ssub.s32 1, %s14
  %s17 = scalar_select 0, %s16, %s14
  $region1: #{tpu_custom_call.1} parent=0
    #allocation4 [shape = 'u8[8192]{0}', space=vmem, size = 0x2000, scoped, tag = 'output window, operand 0, single buffered']
    #allocation5 [shape = 's32[1]{0}', space=sflag, size = 0x4, scoped, tag = 'scoped memory for tpu_custom_call.1']
    %18 = vsyncpa [#allocation5], 0
    // Predicated region
    $region2: #{tpu_custom_call.1} parent=1 // pred_check
      _
    $region3: #{tpu_custom_call.1} parent=1 // pred_check_branch
      %20 = sbr.rel (0) target = $region5
    $region4: #{tpu_custom_call.1} parent=1 // pred_region
      _
    $region5: #{tpu_custom_call.1} parent=1 // pred_fallthru
      _
    // Predicated region
    $region6: #{tpu_custom_call.1} parent=1 // pred_check
      _
    $region7: #{tpu_custom_call.1} parent=1 // pred_check_branch
      %22 = sbr.rel (0) target = $region9
    $region8: #{tpu_custom_call.1} parent=1 // pred_region
      _
    $region9: #{tpu_custom_call.1} parent=1 // pred_fallthru
      _
    // Predicated region
    $region10: #{tpu_custom_call.1} parent=1 // pred_check
      _
    $region11: #{tpu_custom_call.1} parent=1 // pred_check_branch
      %24 = sbr.rel (0) target = $region13
    $region12: #{tpu_custom_call.1} parent=1 // pred_region
      _
    $region13: #{tpu_custom_call.1} parent=1 // pred_fallthru
      _
    // Predicated region
    $region14: #{tpu_custom_call.1} parent=1 // pred_check
      _
    $region15: #{tpu_custom_call.1} parent=1 // pred_check_branch
      %26 = sbr.rel (0) target = $region17
    $region16: #{tpu_custom_call.1} parent=1 // pred_region
      _
    $region17: #{tpu_custom_call.1} parent=1 // pred_fallthru
      _
    // Predicated region
    $region18: #{tpu_custom_call.1} parent=1 // pred_check
      _
    $region19: #{tpu_custom_call.1} parent=1 // pred_check_branch
      %28 = sbr.rel (0) target = $region21
    $region20: #{tpu_custom_call.1} parent=1 // pred_region
      _
    $region21: #{tpu_custom_call.1} parent=1 // pred_fallthru
      _
    // Predicated region
    $region22: #{tpu_custom_call.1} parent=1 // pred_check
      _
    $region23: #{tpu_custom_call.1} parent=1 // pred_check_branch
      %30 = sbr.rel (0) target = $region25
    $region24: #{tpu_custom_call.1} parent=1 // pred_region
      _
    $region25: #{tpu_custom_call.1} parent=1 // pred_fallthru
      _
    // Predicated region
    $region26: #{tpu_custom_call.1} parent=1 // pred_check
      _
    $region27: #{tpu_custom_call.1} parent=1 // pred_check_branch
      %32 = sbr.rel (0) target = $region29
    $region28: #{tpu_custom_call.1} parent=1 // pred_region
      _
    $region29: #{tpu_custom_call.1} parent=1 // pred_fallthru
      _
    // Predicated region
    $region30: #{tpu_custom_call.1} parent=1 // pred_check
      _
    $region31: #{tpu_custom_call.1} parent=1 // pred_check_branch
      %34 = sbr.rel (0) target = $region33
    $region32: #{tpu_custom_call.1} parent=1 // pred_region
      _
    $region33: #{tpu_custom_call.1} parent=1 // pred_fallthru
      _
    // Predicated region
    $region34: #{tpu_custom_call.1} parent=1 // pred_check
      _
    $region35: #{tpu_custom_call.1} parent=1 // pred_check_branch
      %36 = sbr.rel (0) target = $region37
    $region36: #{tpu_custom_call.1} parent=1 // pred_region
      _
    $region37: #{tpu_custom_call.1} parent=1 // pred_fallthru
      _
    // Predicated region
    $region38: #{tpu_custom_call.1} parent=1 // pred_check
      _
    $region39: #{tpu_custom_call.1} parent=1 // pred_check_branch
      %38 = sbr.rel (0) target = $region41
    $region40: #{tpu_custom_call.1} parent=1 // pred_region
      _
    $region41: #{tpu_custom_call.1} parent=1 // pred_fallthru
      _
    // Predicated region
    $region42: #{tpu_custom_call.1} parent=1 // pred_check
      _
    $region43: #{tpu_custom_call.1} parent=1 // pred_check_branch
      %40 = sbr.rel (0) target = $region45
    $region44: #{tpu_custom_call.1} parent=1 // pred_region
      _
    $region45: #{tpu_custom_call.1} parent=1 // pred_fallthru
      _
    // Predicated region
    $region46: #{tpu_custom_call.1} parent=1 // pred_check
      _
    $region47: #{tpu_custom_call.1} parent=1 // pred_check_branch
      %42 = sbr.rel (0) target = $region49
    $region48: #{tpu_custom_call.1} parent=1 // pred_region
      _
    $region49: #{tpu_custom_call.1} parent=1 // pred_fallthru
      _
    // Predicated region
    $region50: #{tpu_custom_call.1} parent=1 // pred_check
      _
    $region51: #{tpu_custom_call.1} parent=1 // pred_check_branch
      %44 = sbr.rel (0) target = $region53
    $region52: #{tpu_custom_call.1} parent=1 // pred_region
      _
    $region53: #{tpu_custom_call.1} parent=1 // pred_fallthru
      _
    %v46 = vld [vmem:[%s0] sm:$0xff]
    %v47 = vld [vmem:[%s0 + $0x8] sm:$0xff]
    %v48 = vld [vmem:[%s1] sm:$0x1]
    %v49 = vld [vmem:[%s2] sm:$0x1]
    %vm50 = vcmask 261120
    %v51 = vsel %vm50, %v46, 0.0
    %52 = vadd.xlane.f32.xlu0 %v51
    %v53 = vpop.xlane.xlu0 %52
    %v54 = vsel %vm50, %v47, 0.0
    %55 = vadd.xlane.f32.xlu0 %v54
    %v56 = vpop.xlane.xlu0 %55
    %v57 = vrcp.pop 32.0
    %v58 = vmul.f32 %v53, %v57
    %v59 = vmul.f32 %v56, %v57
    %v60 = vsub.f32 %v46, %v58
    %v61 = vsub.f32 %v47, %v59
    %v62 = vmul.f32 %v60, %v60
    %v63 = vmul.f32 %v61, %v61
    %v64 = vsel %vm50, %v62, 0.0
    %65 = vadd.xlane.f32.xlu0 %v64
    %v66 = vpop.xlane.xlu0 %65
    %v67 = vsel %vm50, %v63, 0.0
    %68 = vadd.xlane.f32.xlu0 %v67
    %v69 = vpop.xlane.xlu0 %68
    %v70 = vmul.f32 %v66, %v57
    %v71 = vmul.f32 %v69, %v57
    %v72 = vadd.f32 %v70, 1e-05
    %v73 = vadd.f32 %v71, 1e-05
    %v74 = vrsqrt.pop %v72
    %v75 = vrsqrt.pop %v73
    %v76 = vmul.f32 %v60, %v74
    %v77 = vmul.f32 %v61, %v75
    %v79 = vlaneseq
    %v80 = vshrl.u32 %v79, 7
    %v81 = vsub.s32 0, %v80
    %v82 = vrot.slane %v48, %v81
    %v84 = vmul.f32 %v76, %v82
    %v85 = vmul.f32 %v77, %v82
    %v87 = vlaneseq
    %v88 = vshrl.u32 %v87, 7
    %v89 = vsub.s32 0, %v88
    %v90 = vrot.slane %v49, %v89
    %v92 = vadd.f32 %v84, %v90
    %v93 = vadd.f32 %v85, %v90
    %v94 = vpack.c.bf16 %v93, %v92
    %v95 = vld [vmem:[%s3] sm:$0xf]
    %v96 = vld [vmem:[%s3 + $0x4] sm:$0xf]
    %v97 = vld [vmem:[%s3 + $0x8] sm:$0xf]
    %v98 = vld [vmem:[%s3 + $0xc] sm:$0xf]
    %v99 = vld [vmem:[%s4] sm:$0x1]
    %v101 = vlaneseq
    %v102 = vshrl.u32 %v101, 7
    %v103 = vsub.s32 0, %v102
    %v104 = vrot.slane %v99, %v103
    %v110 = vunpack.c.l.b16 %v95
    %v111 = vunpack.c.l.b16 %v96
    %v112 = vunpack.c.l.b16 %v97
    %v113 = vunpack.c.l.b16 %v98
    %v114 = vpack.c.b16 %v111, %v110
    %v115 = vpack.c.b16 %v113, %v112
    %v119 = vsel %vm50, %v94, 0
    %121 = vmatprep.subr.bf16.mxu0 0
    %122 = vmatpush1.bf16.msra.mxu0 %v114
    %123 = vmatprep.subr.bf16.mxu0 0
    %124 = vmatpush1.bf16.msra.mxu0 %v115
    %125 = vmatprep.subr.bf16.mxu0 0
    %126 = vmatpush1.bf16.msra.mxu0 0
    %127 = vmatprep.subr.bf16.mxu0 0
    %128 = vmatpush1.bf16.msra.mxu0 0
    %129 = vmatprep.subr.bf16.mxu0 0
    %130 = vmatpush1.bf16.msra.mxu0 0
    %131 = vmatprep.subr.bf16.mxu0 0
    %132 = vmatpush1.bf16.msra.mxu0 0
    %133 = vmatprep.subr.bf16.mxu0 0
    %134 = vmatpush1.bf16.msra.mxu0 0
    %135 = vmatprep.subr.bf16.mxu0 0
    %136 = vmatpush1.bf16.msra.mxu0 0
    %137 = vmatprep.subr.bf16.mxu0 0
    %138 = vmatpush1.bf16.msra.mxu0 0
    %139 = vmatprep.subr.bf16.mxu0 0
    %140 = vmatpush1.bf16.msra.mxu0 0
    %141 = vmatprep.subr.bf16.mxu0 0
    %142 = vmatpush1.bf16.msra.mxu0 0
    %143 = vmatprep.subr.bf16.mxu0 0
    %144 = vmatpush1.bf16.msra.mxu0 0
    %145 = vmatprep.subr.bf16.mxu0 0
    %146 = vmatpush1.bf16.msra.mxu0 0
    %147 = vmatprep.subr.bf16.mxu0 0
    %148 = vmatpush1.bf16.msra.mxu0 0
    %149 = vmatprep.subr.bf16.mxu0 0
    %150 = vmatpush1.bf16.msra.mxu0 0
    %151 = vmatprep.subr.bf16.mxu0 0
    %152 = vmatpush1.bf16.msra.mxu0 0
    %153 = vmatprep.mubr.bf16.mxu0 0
    %154 = vmatmul.mubr.bf16.gmra.mrb[0].mxu0 %v119
    %v155 = vpop.f32.mrb[0].mxu0
    %v156 = vadd.f32 %v104, %v155
    %v157 = vpop.f32.mrb[0].mxu0
    %v158 = vpop.f32.mrb[0].mxu0
    %v159 = vadd.f32 %v104, %v158
    %v160 = vpop.f32.mrb[0].mxu0
    %161 = vdwg.mxu0
    %v162 = vmul.f32 %v156, 0.35355338
    %v163 = vmul.f32 %v159, 0.35355338
    %166 = vrot.lane.b32.xlu0 %v162, 120
    %v167 = vpop.permute.xlu0 %166
    %168 = vrot.lane.b32.xlu0 %v163, 120
    %v169 = vpop.permute.xlu0 %168
    %172 = vrot.lane.b32.xlu0 %v162, 112
    %v173 = vpop.permute.xlu0 %172
    %174 = vrot.lane.b32.xlu0 %v163, 112
    %v175 = vpop.permute.xlu0 %174
    %178 = vrot.lane.b32.xlu0 %v162, 104
    %v179 = vpop.permute.xlu0 %178
    %180 = vrot.lane.b32.xlu0 %v163, 104
    %v181 = vpop.permute.xlu0 %180
    %v184 = vcombine.low %v162, %v173
    %v185 = vcombine.high %v162, %v173
    %v187 = vunpack.c.l.s4 1983009808
    %v188 = vunpack.c.0.s8 %v187
    %v189 = vlaneseq
    %v190 = vshrl.u32 %v189, 7
    %v191 = vsub.s32 %v188, %v190
    %v192 = vrot.slane %v184, %v191
    %v194 = vunpack.c.l.s4 1983009808
    %v195 = vunpack.c.0.s8 %v194
    %v196 = vlaneseq
    %v197 = vshrl.u32 %v196, 7
    %v198 = vsub.s32 %v195, %v197
    %v199 = vrot.slane %v185, %v198
    %v200 = vcombine.low %v167, %v179
    %v201 = vcombine.high %v167, %v179
    %v203 = vunpack.c.l.s4 1983009808
    %v204 = vunpack.c.0.s8 %v203
    %v205 = vlaneseq
    %v206 = vshrl.u32 %v205, 7
    %v207 = vsub.s32 %v204, %v206
    %v208 = vrot.slane %v200, %v207
    %v210 = vunpack.c.l.s4 1983009808
    %v211 = vunpack.c.0.s8 %v210
    %v212 = vlaneseq
    %v213 = vshrl.u32 %v212, 7
    %v214 = vsub.s32 %v211, %v213
    %v215 = vrot.slane %v201, %v214
    %v216 = vcombine.low %v192, %v208
    %v217 = vcombine.high %v192, %v208
    %v219 = vunpack.c.l.s4 1934713408
    %v220 = vunpack.c.0.s8 %v219
    %v221 = vlaneseq
    %v222 = vshrl.u32 %v221, 7
    %v223 = vsub.s32 %v220, %v222
    %v224 = vrot.slane %v216, %v223
    %v226 = vunpack.c.l.s4 1934713408
    %v227 = vunpack.c.0.s8 %v226
    %v228 = vlaneseq
    %v229 = vshrl.u32 %v228, 7
    %v230 = vsub.s32 %v227, %v229
    %v231 = vrot.slane %v217, %v230
    %v232 = vcombine.low %v199, %v215
    %v233 = vcombine.high %v199, %v215
    %v235 = vunpack.c.l.s4 1934713408
    %v236 = vunpack.c.0.s8 %v235
    %v237 = vlaneseq
    %v238 = vshrl.u32 %v237, 7
    %v239 = vsub.s32 %v236, %v238
    %v240 = vrot.slane %v232, %v239
    %v242 = vunpack.c.l.s4 1934713408
    %v243 = vunpack.c.0.s8 %v242
    %v244 = vlaneseq
    %v245 = vshrl.u32 %v244, 7
    %v246 = vsub.s32 %v243, %v245
    %v247 = vrot.slane %v233, %v246
    %v248 = vcombine.high %v224, 0.0
    %v249 = vcombine.high %v231, 0.0
    %v250 = vcombine.high %v240, 0.0
    %v251 = vcombine.high %v247, 0.0
    %v252 = vcombine.low %v163, %v175
    %v253 = vcombine.high %v163, %v175
    %v255 = vunpack.c.l.s4 1983009808
    %v256 = vunpack.c.0.s8 %v255
    %v257 = vlaneseq
    %v258 = vshrl.u32 %v257, 7
    %v259 = vsub.s32 %v256, %v258
    %v260 = vrot.slane %v252, %v259
    %v262 = vunpack.c.l.s4 1983009808
    %v263 = vunpack.c.0.s8 %v262
    %v264 = vlaneseq
    %v265 = vshrl.u32 %v264, 7
    %v266 = vsub.s32 %v263, %v265
    %v267 = vrot.slane %v253, %v266
    %v268 = vcombine.low %v169, %v181
    %v269 = vcombine.high %v169, %v181
    %v271 = vunpack.c.l.s4 1983009808
    %v272 = vunpack.c.0.s8 %v271
    %v273 = vlaneseq
    %v274 = vshrl.u32 %v273, 7
    %v275 = vsub.s32 %v272, %v274
    %v276 = vrot.slane %v268, %v275
    %v278 = vunpack.c.l.s4 1983009808
    %v279 = vunpack.c.0.s8 %v278
    %v280 = vlaneseq
    %v281 = vshrl.u32 %v280, 7
    %v282 = vsub.s32 %v279, %v281
    %v283 = vrot.slane %v269, %v282
    %v284 = vcombine.low %v260, %v276
    %v285 = vcombine.high %v260, %v276
    %v287 = vunpack.c.l.s4 1934713408
    %v288 = vunpack.c.0.s8 %v287
    %v289 = vlaneseq
    %v290 = vshrl.u32 %v289, 7
    %v291 = vsub.s32 %v288, %v290
    %v292 = vrot.slane %v284, %v291
    %v294 = vunpack.c.l.s4 1934713408
    %v295 = vunpack.c.0.s8 %v294
    %v296 = vlaneseq
    %v297 = vshrl.u32 %v296, 7
    %v298 = vsub.s32 %v295, %v297
    %v299 = vrot.slane %v285, %v298
    %v300 = vcombine.low %v267, %v283
    %v301 = vcombine.high %v267, %v283
    %v303 = vunpack.c.l.s4 1934713408
    %v304 = vunpack.c.0.s8 %v303
    %v305 = vlaneseq
    %v306 = vshrl.u32 %v305, 7
    %v307 = vsub.s32 %v304, %v306
    %v308 = vrot.slane %v300, %v307
    %v310 = vunpack.c.l.s4 1934713408
    %v311 = vunpack.c.0.s8 %v310
    %v312 = vlaneseq
    %v313 = vshrl.u32 %v312, 7
    %v314 = vsub.s32 %v311, %v313
    %v315 = vrot.slane %v301, %v314
    %v316 = vcombine.high %v292, 0.0
    %v317 = vcombine.high %v299, 0.0
    %v318 = vcombine.high %v308, 0.0
    %v319 = vcombine.high %v315, 0.0
    %v320 = vcombine.low %v224, %v231
    %v322 = vunpack.c.l.s4 1983009808
    %v323 = vunpack.c.0.s8 %v322
    %v324 = vlaneseq
    %v325 = vshrl.u32 %v324, 7
    %v326 = vsub.s32 %v323, %v325
    %v327 = vrot.slane %v320, %v326
    %v328 = vcombine.low %v248, %v249
    %v330 = vunpack.c.l.s4 1983009808
    %v331 = vunpack.c.0.s8 %v330
    %v332 = vlaneseq
    %v333 = vshrl.u32 %v332, 7
    %v334 = vsub.s32 %v331, %v333
    %v335 = vrot.slane %v328, %v334
    %v336 = vcombine.low %v240, %v247
    %v338 = vunpack.c.l.s4 1983009808
    %v339 = vunpack.c.0.s8 %v338
    %v340 = vlaneseq
    %v341 = vshrl.u32 %v340, 7
    %v342 = vsub.s32 %v339, %v341
    %v343 = vrot.slane %v336, %v342
    %v344 = vcombine.low %v250, %v251
    %v346 = vunpack.c.l.s4 1983009808
    %v347 = vunpack.c.0.s8 %v346
    %v348 = vlaneseq
    %v349 = vshrl.u32 %v348, 7
    %v350 = vsub.s32 %v347, %v349
    %v351 = vrot.slane %v344, %v350
    %v352 = vcombine.low %v327, %v335
    %v353 = vcombine.high %v327, %v335
    %v355 = vunpack.c.l.s4 1934713408
    %v356 = vunpack.c.0.s8 %v355
    %v357 = vlaneseq
    %v358 = vshrl.u32 %v357, 7
    %v359 = vsub.s32 %v356, %v358
    %v360 = vrot.slane %v352, %v359
    %v362 = vunpack.c.l.s4 1934713408
    %v363 = vunpack.c.0.s8 %v362
    %v364 = vlaneseq
    %v365 = vshrl.u32 %v364, 7
    %v366 = vsub.s32 %v363, %v365
    %v367 = vrot.slane %v353, %v366
    %v368 = vcombine.low %v343, %v351
    %v369 = vcombine.high %v343, %v351
    %v371 = vunpack.c.l.s4 1934713408
    %v372 = vunpack.c.0.s8 %v371
    %v373 = vlaneseq
    %v374 = vshrl.u32 %v373, 7
    %v375 = vsub.s32 %v372, %v374
    %v376 = vrot.slane %v368, %v375
    %v378 = vunpack.c.l.s4 1934713408
    %v379 = vunpack.c.0.s8 %v378
    %v380 = vlaneseq
    %v381 = vshrl.u32 %v380, 7
    %v382 = vsub.s32 %v379, %v381
    %v383 = vrot.slane %v369, %v382
    %v384 = vcombine.low %v360, %v376
    %v385 = vcombine.high %v360, %v376
    %v386 = vcombine.low %v367, %v383
    %v387 = vcombine.high %v367, %v383
    %v388 = vcombine.low %v292, %v299
    %v390 = vunpack.c.l.s4 1983009808
    %v391 = vunpack.c.0.s8 %v390
    %v392 = vlaneseq
    %v393 = vshrl.u32 %v392, 7
    %v394 = vsub.s32 %v391, %v393
    %v395 = vrot.slane %v388, %v394
    %v396 = vcombine.low %v316, %v317
    %v398 = vunpack.c.l.s4 1983009808
    %v399 = vunpack.c.0.s8 %v398
    %v400 = vlaneseq
    %v401 = vshrl.u32 %v400, 7
    %v402 = vsub.s32 %v399, %v401
    %v403 = vrot.slane %v396, %v402
    %v404 = vcombine.low %v308, %v315
    %v406 = vunpack.c.l.s4 1983009808
    %v407 = vunpack.c.0.s8 %v406
    %v408 = vlaneseq
    %v409 = vshrl.u32 %v408, 7
    %v410 = vsub.s32 %v407, %v409
    %v411 = vrot.slane %v404, %v410
    %v412 = vcombine.low %v318, %v319
    %v414 = vunpack.c.l.s4 1983009808
    %v415 = vunpack.c.0.s8 %v414
    %v416 = vlaneseq
    %v417 = vshrl.u32 %v416, 7
    %v418 = vsub.s32 %v415, %v417
    %v419 = vrot.slane %v412, %v418
    %v420 = vcombine.low %v395, %v403
    %v421 = vcombine.high %v395, %v403
    %v423 = vunpack.c.l.s4 1934713408
    %v424 = vunpack.c.0.s8 %v423
    %v425 = vlaneseq
    %v426 = vshrl.u32 %v425, 7
    %v427 = vsub.s32 %v424, %v426
    %v428 = vrot.slane %v420, %v427
    %v430 = vunpack.c.l.s4 1934713408
    %v431 = vunpack.c.0.s8 %v430
    %v432 = vlaneseq
    %v433 = vshrl.u32 %v432, 7
    %v434 = vsub.s32 %v431, %v433
    %v435 = vrot.slane %v421, %v434
    %v436 = vcombine.low %v411, %v419
    %v437 = vcombine.high %v411, %v419
    %v439 = vunpack.c.l.s4 1934713408
    %v440 = vunpack.c.0.s8 %v439
    %v441 = vlaneseq
    %v442 = vshrl.u32 %v441, 7
    %v443 = vsub.s32 %v440, %v442
    %v444 = vrot.slane %v436, %v443
    %v446 = vunpack.c.l.s4 1934713408
    %v447 = vunpack.c.0.s8 %v446
    %v448 = vlaneseq
    %v449 = vshrl.u32 %v448, 7
    %v450 = vsub.s32 %v447, %v449
    %v451 = vrot.slane %v437, %v450
    %v452 = vcombine.low %v428, %v444
    %v453 = vcombine.high %v428, %v444
    %v454 = vcombine.low %v435, %v451
    %v455 = vcombine.high %v435, %v451
    %v456 = vpack.c.bf16 %v384, %v384
    %v457 = vpack.c.bf16 %v385, %v385
    %v458 = vpack.c.bf16 %v386, %v386
    %v459 = vpack.c.bf16 %v387, %v387
    %v460 = vpack.c.bf16 %v452, %v452
    %v461 = vpack.c.bf16 %v453, %v453
    %v462 = vpack.c.bf16 %v454, %v454
    %v463 = vpack.c.bf16 %v455, %v455
    %466 = vrot.lane.b32.xlu0 %v156, 120
    %v467 = vpop.permute.xlu0 %466
    %468 = vrot.lane.b32.xlu0 %v159, 120
    %v469 = vpop.permute.xlu0 %468
    %470 = vrot.lane.b32.xlu0 %v156, 112
    %v471 = vpop.permute.xlu0 %470
    %472 = vrot.lane.b32.xlu0 %v159, 112
    %v473 = vpop.permute.xlu0 %472
    %474 = vrot.lane.b32.xlu0 %v156, 104
    %v475 = vpop.permute.xlu0 %474
    %476 = vrot.lane.b32.xlu0 %v159, 104
    %v477 = vpop.permute.xlu0 %476
    %478 = vrot.lane.b32.xlu0 %v156, 96
    %v479 = vpop.permute.xlu0 %478
    %480 = vrot.lane.b32.xlu0 %v159, 96
    %v481 = vpop.permute.xlu0 %480
    %482 = vrot.lane.b32.xlu0 %v467, 96
    %v483 = vpop.permute.xlu0 %482
    %484 = vrot.lane.b32.xlu0 %v469, 96
    %v485 = vpop.permute.xlu0 %484
    %486 = vrot.lane.b32.xlu0 %v471, 96
    %v487 = vpop.permute.xlu0 %486
    %488 = vrot.lane.b32.xlu0 %v473, 96
    %v489 = vpop.permute.xlu0 %488
    %490 = vrot.lane.b32.xlu0 %v475, 96
    %v491 = vpop.permute.xlu0 %490
    %492 = vrot.lane.b32.xlu0 %v477, 96
    %v493 = vpop.permute.xlu0 %492
    %v502 = vcombine.low %v479, %v487
    %v503 = vcombine.high %v479, %v487
    %v505 = vunpack.c.l.s4 1983009808
    %v506 = vunpack.c.0.s8 %v505
    %v507 = vlaneseq
    %v508 = vshrl.u32 %v507, 7
    %v509 = vsub.s32 %v506, %v508
    %v510 = vrot.slane %v502, %v509
    %v512 = vunpack.c.l.s4 1983009808
    %v513 = vunpack.c.0.s8 %v512
    %v514 = vlaneseq
    %v515 = vshrl.u32 %v514, 7
    %v516 = vsub.s32 %v513, %v515
    %v517 = vrot.slane %v503, %v516
    %v518 = vcombine.low %v483, %v491
    %v519 = vcombine.high %v483, %v491
    %v521 = vunpack.c.l.s4 1983009808
    %v522 = vunpack.c.0.s8 %v521
    %v523 = vlaneseq
    %v524 = vshrl.u32 %v523, 7
    %v525 = vsub.s32 %v522, %v524
    %v526 = vrot.slane %v518, %v525
    %v528 = vunpack.c.l.s4 1983009808
    %v529 = vunpack.c.0.s8 %v528
    %v530 = vlaneseq
    %v531 = vshrl.u32 %v530, 7
    %v532 = vsub.s32 %v529, %v531
    %v533 = vrot.slane %v519, %v532
    %v534 = vcombine.low %v510, %v526
    %v535 = vcombine.high %v510, %v526
    %v537 = vunpack.c.l.s4 1934713408
    %v538 = vunpack.c.0.s8 %v537
    %v539 = vlaneseq
    %v540 = vshrl.u32 %v539, 7
    %v541 = vsub.s32 %v538, %v540
    %v542 = vrot.slane %v534, %v541
    %v544 = vunpack.c.l.s4 1934713408
    %v545 = vunpack.c.0.s8 %v544
    %v546 = vlaneseq
    %v547 = vshrl.u32 %v546, 7
    %v548 = vsub.s32 %v545, %v547
    %v549 = vrot.slane %v535, %v548
    %v550 = vcombine.low %v517, %v533
    %v551 = vcombine.high %v517, %v533
    %v553 = vunpack.c.l.s4 1934713408
    %v554 = vunpack.c.0.s8 %v553
    %v555 = vlaneseq
    %v556 = vshrl.u32 %v555, 7
    %v557 = vsub.s32 %v554, %v556
    %v558 = vrot.slane %v550, %v557
    %v560 = vunpack.c.l.s4 1934713408
    %v561 = vunpack.c.0.s8 %v560
    %v562 = vlaneseq
    %v563 = vshrl.u32 %v562, 7
    %v564 = vsub.s32 %v561, %v563
    %v565 = vrot.slane %v551, %v564
    %v566 = vcombine.high %v542, 0.0
    %v567 = vcombine.high %v549, 0.0
    %v568 = vcombine.high %v558, 0.0
    %v569 = vcombine.high %v565, 0.0
    %v570 = vcombine.low %v481, %v489
    %v571 = vcombine.high %v481, %v489
    %v573 = vunpack.c.l.s4 1983009808
    %v574 = vunpack.c.0.s8 %v573
    %v575 = vlaneseq
    %v576 = vshrl.u32 %v575, 7
    %v577 = vsub.s32 %v574, %v576
    %v578 = vrot.slane %v570, %v577
    %v580 = vunpack.c.l.s4 1983009808
    %v581 = vunpack.c.0.s8 %v580
    %v582 = vlaneseq
    %v583 = vshrl.u32 %v582, 7
    %v584 = vsub.s32 %v581, %v583
    %v585 = vrot.slane %v571, %v584
    %v586 = vcombine.low %v485, %v493
    %v587 = vcombine.high %v485, %v493
    %v589 = vunpack.c.l.s4 1983009808
    %v590 = vunpack.c.0.s8 %v589
    %v591 = vlaneseq
    %v592 = vshrl.u32 %v591, 7
    %v593 = vsub.s32 %v590, %v592
    %v594 = vrot.slane %v586, %v593
    %v596 = vunpack.c.l.s4 1983009808
    %v597 = vunpack.c.0.s8 %v596
    %v598 = vlaneseq
    %v599 = vshrl.u32 %v598, 7
    %v600 = vsub.s32 %v597, %v599
    %v601 = vrot.slane %v587, %v600
    %v602 = vcombine.low %v578, %v594
    %v603 = vcombine.high %v578, %v594
    %v605 = vunpack.c.l.s4 1934713408
    %v606 = vunpack.c.0.s8 %v605
    %v607 = vlaneseq
    %v608 = vshrl.u32 %v607, 7
    %v609 = vsub.s32 %v606, %v608
    %v610 = vrot.slane %v602, %v609
    %v612 = vunpack.c.l.s4 1934713408
    %v613 = vunpack.c.0.s8 %v612
    %v614 = vlaneseq
    %v615 = vshrl.u32 %v614, 7
    %v616 = vsub.s32 %v613, %v615
    %v617 = vrot.slane %v603, %v616
    %v618 = vcombine.low %v585, %v601
    %v619 = vcombine.high %v585, %v601
    %v621 = vunpack.c.l.s4 1934713408
    %v622 = vunpack.c.0.s8 %v621
    %v623 = vlaneseq
    %v624 = vshrl.u32 %v623, 7
    %v625 = vsub.s32 %v622, %v624
    %v626 = vrot.slane %v618, %v625
    %v628 = vunpack.c.l.s4 1934713408
    %v629 = vunpack.c.0.s8 %v628
    %v630 = vlaneseq
    %v631 = vshrl.u32 %v630, 7
    %v632 = vsub.s32 %v629, %v631
    %v633 = vrot.slane %v619, %v632
    %v634 = vcombine.high %v610, 0.0
    %v635 = vcombine.high %v617, 0.0
    %v636 = vcombine.high %v626, 0.0
    %v637 = vcombine.high %v633, 0.0
    %v638 = vcombine.low %v542, %v549
    %v640 = vunpack.c.l.s4 1983009808
    %v641 = vunpack.c.0.s8 %v640
    %v642 = vlaneseq
    %v643 = vshrl.u32 %v642, 7
    %v644 = vsub.s32 %v641, %v643
    %v645 = vrot.slane %v638, %v644
    %v646 = vcombine.low %v566, %v567
    %v648 = vunpack.c.l.s4 1983009808
    %v649 = vunpack.c.0.s8 %v648
    %v650 = vlaneseq
    %v651 = vshrl.u32 %v650, 7
    %v652 = vsub.s32 %v649, %v651
    %v653 = vrot.slane %v646, %v652
    %v654 = vcombine.low %v558, %v565
    %v656 = vunpack.c.l.s4 1983009808
    %v657 = vunpack.c.0.s8 %v656
    %v658 = vlaneseq
    %v659 = vshrl.u32 %v658, 7
    %v660 = vsub.s32 %v657, %v659
    %v661 = vrot.slane %v654, %v660
    %v662 = vcombine.low %v568, %v569
    %v664 = vunpack.c.l.s4 1983009808
    %v665 = vunpack.c.0.s8 %v664
    %v666 = vlaneseq
    %v667 = vshrl.u32 %v666, 7
    %v668 = vsub.s32 %v665, %v667
    %v669 = vrot.slane %v662, %v668
    %v670 = vcombine.low %v645, %v653
    %v671 = vcombine.high %v645, %v653
    %v673 = vunpack.c.l.s4 1934713408
    %v674 = vunpack.c.0.s8 %v673
    %v675 = vlaneseq
    %v676 = vshrl.u32 %v675, 7
    %v677 = vsub.s32 %v674, %v676
    %v678 = vrot.slane %v670, %v677
    %v680 = vunpack.c.l.s4 1934713408
    %v681 = vunpack.c.0.s8 %v680
    %v682 = vlaneseq
    %v683 = vshrl.u32 %v682, 7
    %v684 = vsub.s32 %v681, %v683
    %v685 = vrot.slane %v671, %v684
    %v686 = vcombine.low %v661, %v669
    %v687 = vcombine.high %v661, %v669
    %v689 = vunpack.c.l.s4 1934713408
    %v690 = vunpack.c.0.s8 %v689
    %v691 = vlaneseq
    %v692 = vshrl.u32 %v691, 7
    %v693 = vsub.s32 %v690, %v692
    %v694 = vrot.slane %v686, %v693
    %v696 = vunpack.c.l.s4 1934713408
    %v697 = vunpack.c.0.s8 %v696
    %v698 = vlaneseq
    %v699 = vshrl.u32 %v698, 7
    %v700 = vsub.s32 %v697, %v699
    %v701 = vrot.slane %v687, %v700
    %v702 = vcombine.low %v678, %v694
    %v703 = vcombine.high %v678, %v694
    %v704 = vcombine.low %v685, %v701
    %v705 = vcombine.high %v685, %v701
    %v706 = vcombine.low %v610, %v617
    %v708 = vunpack.c.l.s4 1983009808
    %v709 = vunpack.c.0.s8 %v708
    %v710 = vlaneseq
    %v711 = vshrl.u32 %v710, 7
    %v712 = vsub.s32 %v709, %v711
    %v713 = vrot.slane %v706, %v712
    %v714 = vcombine.low %v634, %v635
    %v716 = vunpack.c.l.s4 1983009808
    %v717 = vunpack.c.0.s8 %v716
    %v718 = vlaneseq
    %v719 = vshrl.u32 %v718, 7
    %v720 = vsub.s32 %v717, %v719
    %v721 = vrot.slane %v714, %v720
    %v722 = vcombine.low %v626, %v633
    %v724 = vunpack.c.l.s4 1983009808
    %v725 = vunpack.c.0.s8 %v724
    %v726 = vlaneseq
    %v727 = vshrl.u32 %v726, 7
    %v728 = vsub.s32 %v725, %v727
    %v729 = vrot.slane %v722, %v728
    %v730 = vcombine.low %v636, %v637
    %v732 = vunpack.c.l.s4 1983009808
    %v733 = vunpack.c.0.s8 %v732
    %v734 = vlaneseq
    %v735 = vshrl.u32 %v734, 7
    %v736 = vsub.s32 %v733, %v735
    %v737 = vrot.slane %v730, %v736
    %v738 = vcombine.low %v713, %v721
    %v739 = vcombine.high %v713, %v721
    %v741 = vunpack.c.l.s4 1934713408
    %v742 = vunpack.c.0.s8 %v741
    %v743 = vlaneseq
    %v744 = vshrl.u32 %v743, 7
    %v745 = vsub.s32 %v742, %v744
    %v746 = vrot.slane %v738, %v745
    %v748 = vunpack.c.l.s4 1934713408
    %v749 = vunpack.c.0.s8 %v748
    %v750 = vlaneseq
    %v751 = vshrl.u32 %v750, 7
    %v752 = vsub.s32 %v749, %v751
    %v753 = vrot.slane %v739, %v752
    %v754 = vcombine.low %v729, %v737
    %v755 = vcombine.high %v729, %v737
    %v757 = vunpack.c.l.s4 1934713408
    %v758 = vunpack.c.0.s8 %v757
    %v759 = vlaneseq
    %v760 = vshrl.u32 %v759, 7
    %v761 = vsub.s32 %v758, %v760
    %v762 = vrot.slane %v754, %v761
    %v764 = vunpack.c.l.s4 1934713408
    %v765 = vunpack.c.0.s8 %v764
    %v766 = vlaneseq
    %v767 = vshrl.u32 %v766, 7
    %v768 = vsub.s32 %v765, %v767
    %v769 = vrot.slane %v755, %v768
    %v770 = vcombine.low %v746, %v762
    %v771 = vcombine.high %v746, %v762
    %v772 = vcombine.low %v753, %v769
    %v773 = vcombine.high %v753, %v769
    %v774 = vpack.c.bf16 %v702, %v702
    %v775 = vpack.c.bf16 %v703, %v703
    %v776 = vpack.c.bf16 %v704, %v704
    %v777 = vpack.c.bf16 %v705, %v705
    %v778 = vpack.c.bf16 %v770, %v770
    %v779 = vpack.c.bf16 %v771, %v771
    %v780 = vpack.c.bf16 %v772, %v772
    %v781 = vpack.c.bf16 %v773, %v773
    %vm782 = vcmask 60416
    %783 = vst.msk [vmem:[#allocation2] sm:$0xf] %vm782, %v774
    %784 = vst.msk [vmem:[#allocation2 + $0x4] sm:$0xf] %vm782, %v775
    %785 = vst.msk [vmem:[#allocation2 + $0x8] sm:$0xf] %vm782, %v776
    %786 = vst.msk [vmem:[#allocation2 + $0xc] sm:$0xf] %vm782, %v777
    %787 = vst.msk [vmem:[#allocation2 + $0x10] sm:$0xf] %vm782, %v778
    %788 = vst.msk [vmem:[#allocation2 + $0x14] sm:$0xf] %vm782, %v779
    %789 = vst.msk [vmem:[#allocation2 + $0x18] sm:$0xf] %vm782, %v780
    %790 = vst.msk [vmem:[#allocation2 + $0x1c] sm:$0xf] %vm782, %v781
    %791 = vrot.lane.b32.xlu0 %v156, 64
    %v792 = vpop.permute.xlu0 %791
    %793 = vrot.lane.b32.xlu0 %v159, 64
    %v794 = vpop.permute.xlu0 %793
    %795 = vrot.lane.b32.xlu0 %v467, 64
    %v796 = vpop.permute.xlu0 %795
    %797 = vrot.lane.b32.xlu0 %v469, 64
    %v798 = vpop.permute.xlu0 %797
    %799 = vrot.lane.b32.xlu0 %v471, 64
    %v800 = vpop.permute.xlu0 %799
    %801 = vrot.lane.b32.xlu0 %v473, 64
    %v802 = vpop.permute.xlu0 %801
    %803 = vrot.lane.b32.xlu0 %v475, 64
    %v804 = vpop.permute.xlu0 %803
    %805 = vrot.lane.b32.xlu0 %v477, 64
    %v806 = vpop.permute.xlu0 %805
    %v815 = vcombine.low %v792, %v800
    %v816 = vcombine.high %v792, %v800
    %v818 = vunpack.c.l.s4 1983009808
    %v819 = vunpack.c.0.s8 %v818
    %v820 = vlaneseq
    %v821 = vshrl.u32 %v820, 7
    %v822 = vsub.s32 %v819, %v821
    %v823 = vrot.slane %v815, %v822
    %v825 = vunpack.c.l.s4 1983009808
    %v826 = vunpack.c.0.s8 %v825
    %v827 = vlaneseq
    %v828 = vshrl.u32 %v827, 7
    %v829 = vsub.s32 %v826, %v828
    %v830 = vrot.slane %v816, %v829
    %v831 = vcombine.low %v796, %v804
    %v832 = vcombine.high %v796, %v804
    %v834 = vunpack.c.l.s4 1983009808
    %v835 = vunpack.c.0.s8 %v834
    %v836 = vlaneseq
    %v837 = vshrl.u32 %v836, 7
    %v838 = vsub.s32 %v835, %v837
    %v839 = vrot.slane %v831, %v838
    %v841 = vunpack.c.l.s4 1983009808
    %v842 = vunpack.c.0.s8 %v841
    %v843 = vlaneseq
    %v844 = vshrl.u32 %v843, 7
    %v845 = vsub.s32 %v842, %v844
    %v846 = vrot.slane %v832, %v845
    %v847 = vcombine.low %v823, %v839
    %v848 = vcombine.high %v823, %v839
    %v850 = vunpack.c.l.s4 1934713408
    %v851 = vunpack.c.0.s8 %v850
    %v852 = vlaneseq
    %v853 = vshrl.u32 %v852, 7
    %v854 = vsub.s32 %v851, %v853
    %v855 = vrot.slane %v847, %v854
    %v857 = vunpack.c.l.s4 1934713408
    %v858 = vunpack.c.0.s8 %v857
    %v859 = vlaneseq
    %v860 = vshrl.u32 %v859, 7
    %v861 = vsub.s32 %v858, %v860
    %v862 = vrot.slane %v848, %v861
    %v863 = vcombine.low %v830, %v846
    %v864 = vcombine.high %v830, %v846
    %v866 = vunpack.c.l.s4 1934713408
    %v867 = vunpack.c.0.s8 %v866
    %v868 = vlaneseq
    %v869 = vshrl.u32 %v868, 7
    %v870 = vsub.s32 %v867, %v869
    %v871 = vrot.slane %v863, %v870
    %v873 = vunpack.c.l.s4 1934713408
    %v874 = vunpack.c.0.s8 %v873
    %v875 = vlaneseq
    %v876 = vshrl.u32 %v875, 7
    %v877 = vsub.s32 %v874, %v876
    %v878 = vrot.slane %v864, %v877
    %v879 = vcombine.high %v855, 0.0
    %v880 = vcombine.high %v862, 0.0
    %v881 = vcombine.high %v871, 0.0
    %v882 = vcombine.high %v878, 0.0
    %v883 = vcombine.low %v794, %v802
    %v884 = vcombine.high %v794, %v802
    %v886 = vunpack.c.l.s4 1983009808
    %v887 = vunpack.c.0.s8 %v886
    %v888 = vlaneseq
    %v889 = vshrl.u32 %v888, 7
    %v890 = vsub.s32 %v887, %v889
    %v891 = vrot.slane %v883, %v890
    %v893 = vunpack.c.l.s4 1983009808
    %v894 = vunpack.c.0.s8 %v893
    %v895 = vlaneseq
    %v896 = vshrl.u32 %v895, 7
    %v897 = vsub.s32 %v894, %v896
    %v898 = vrot.slane %v884, %v897
    %v899 = vcombine.low %v798, %v806
    %v900 = vcombine.high %v798, %v806
    %v902 = vunpack.c.l.s4 1983009808
    %v903 = vunpack.c.0.s8 %v902
    %v904 = vlaneseq
    %v905 = vshrl.u32 %v904, 7
    %v906 = vsub.s32 %v903, %v905
    %v907 = vrot.slane %v899, %v906
    %v909 = vunpack.c.l.s4 1983009808
    %v910 = vunpack.c.0.s8 %v909
    %v911 = vlaneseq
    %v912 = vshrl.u32 %v911, 7
    %v913 = vsub.s32 %v910, %v912
    %v914 = vrot.slane %v900, %v913
    %v915 = vcombine.low %v891, %v907
    %v916 = vcombine.high %v891, %v907
    %v918 = vunpack.c.l.s4 1934713408
    %v919 = vunpack.c.0.s8 %v918
    %v920 = vlaneseq
    %v921 = vshrl.u32 %v920, 7
    %v922 = vsub.s32 %v919, %v921
    %v923 = vrot.slane %v915, %v922
    %v925 = vunpack.c.l.s4 1934713408
    %v926 = vunpack.c.0.s8 %v925
    %v927 = vlaneseq
    %v928 = vshrl.u32 %v927, 7
    %v929 = vsub.s32 %v926, %v928
    %v930 = vrot.slane %v916, %v929
    %v931 = vcombine.low %v898, %v914
    %v932 = vcombine.high %v898, %v914
    %v934 = vunpack.c.l.s4 1934713408
    %v935 = vunpack.c.0.s8 %v934
    %v936 = vlaneseq
    %v937 = vshrl.u32 %v936, 7
    %v938 = vsub.s32 %v935, %v937
    %v939 = vrot.slane %v931, %v938
    %v941 = vunpack.c.l.s4 1934713408
    %v942 = vunpack.c.0.s8 %v941
    %v943 = vlaneseq
    %v944 = vshrl.u32 %v943, 7
    %v945 = vsub.s32 %v942, %v944
    %v946 = vrot.slane %v932, %v945
    %v947 = vcombine.high %v923, 0.0
    %v948 = vcombine.high %v930, 0.0
    %v949 = vcombine.high %v939, 0.0
    %v950 = vcombine.high %v946, 0.0
    %v951 = vcombine.low %v855, %v862
    %v953 = vunpack.c.l.s4 1983009808
    %v954 = vunpack.c.0.s8 %v953
    %v955 = vlaneseq
    %v956 = vshrl.u32 %v955, 7
    %v957 = vsub.s32 %v954, %v956
    %v958 = vrot.slane %v951, %v957
    %v959 = vcombine.low %v879, %v880
    %v961 = vunpack.c.l.s4 1983009808
    %v962 = vunpack.c.0.s8 %v961
    %v963 = vlaneseq
    %v964 = vshrl.u32 %v963, 7
    %v965 = vsub.s32 %v962, %v964
    %v966 = vrot.slane %v959, %v965
    %v967 = vcombine.low %v871, %v878
    %v969 = vunpack.c.l.s4 1983009808
    %v970 = vunpack.c.0.s8 %v969
    %v971 = vlaneseq
    %v972 = vshrl.u32 %v971, 7
    %v973 = vsub.s32 %v970, %v972
    %v974 = vrot.slane %v967, %v973
    %v975 = vcombine.low %v881, %v882
    %v977 = vunpack.c.l.s4 1983009808
    %v978 = vunpack.c.0.s8 %v977
    %v979 = vlaneseq
    %v980 = vshrl.u32 %v979, 7
    %v981 = vsub.s32 %v978, %v980
    %v982 = vrot.slane %v975, %v981
    %v983 = vcombine.low %v958, %v966
    %v984 = vcombine.high %v958, %v966
    %v986 = vunpack.c.l.s4 1934713408
    %v987 = vunpack.c.0.s8 %v986
    %v988 = vlaneseq
    %v989 = vshrl.u32 %v988, 7
    %v990 = vsub.s32 %v987, %v989
    %v991 = vrot.slane %v983, %v990
    %v993 = vunpack.c.l.s4 1934713408
    %v994 = vunpack.c.0.s8 %v993
    %v995 = vlaneseq
    %v996 = vshrl.u32 %v995, 7
    %v997 = vsub.s32 %v994, %v996
    %v998 = vrot.slane %v984, %v997
    %v999 = vcombine.low %v974, %v982
    %v1000 = vcombine.high %v974, %v982
    %v1002 = vunpack.c.l.s4 1934713408
    %v1003 = vunpack.c.0.s8 %v1002
    %v1004 = vlaneseq
    %v1005 = vshrl.u32 %v1004, 7
    %v1006 = vsub.s32 %v1003, %v1005
    %v1007 = vrot.slane %v999, %v1006
    %v1009 = vunpack.c.l.s4 1934713408
    %v1010 = vunpack.c.0.s8 %v1009
    %v1011 = vlaneseq
    %v1012 = vshrl.u32 %v1011, 7
    %v1013 = vsub.s32 %v1010, %v1012
    %v1014 = vrot.slane %v1000, %v1013
    %v1015 = vcombine.low %v991, %v1007
    %v1016 = vcombine.high %v991, %v1007
    %v1017 = vcombine.low %v998, %v1014
    %v1018 = vcombine.high %v998, %v1014
    %v1019 = vcombine.low %v923, %v930
    %v1021 = vunpack.c.l.s4 1983009808
    %v1022 = vunpack.c.0.s8 %v1021
    %v1023 = vlaneseq
    %v1024 = vshrl.u32 %v1023, 7
    %v1025 = vsub.s32 %v1022, %v1024
    %v1026 = vrot.slane %v1019, %v1025
    %v1027 = vcombine.low %v947, %v948
    %v1029 = vunpack.c.l.s4 1983009808
    %v1030 = vunpack.c.0.s8 %v1029
    %v1031 = vlaneseq
    %v1032 = vshrl.u32 %v1031, 7
    %v1033 = vsub.s32 %v1030, %v1032
    %v1034 = vrot.slane %v1027, %v1033
    %v1035 = vcombine.low %v939, %v946
    %v1037 = vunpack.c.l.s4 1983009808
    %v1038 = vunpack.c.0.s8 %v1037
    %v1039 = vlaneseq
    %v1040 = vshrl.u32 %v1039, 7
    %v1041 = vsub.s32 %v1038, %v1040
    %v1042 = vrot.slane %v1035, %v1041
    %v1043 = vcombine.low %v949, %v950
    %v1045 = vunpack.c.l.s4 1983009808
    %v1046 = vunpack.c.0.s8 %v1045
    %v1047 = vlaneseq
    %v1048 = vshrl.u32 %v1047, 7
    %v1049 = vsub.s32 %v1046, %v1048
    %v1050 = vrot.slane %v1043, %v1049
    %v1051 = vcombine.low %v1026, %v1034
    %v1052 = vcombine.high %v1026, %v1034
    %v1054 = vunpack.c.l.s4 1934713408
    %v1055 = vunpack.c.0.s8 %v1054
    %v1056 = vlaneseq
    %v1057 = vshrl.u32 %v1056, 7
    %v1058 = vsub.s32 %v1055, %v1057
    %v1059 = vrot.slane %v1051, %v1058
    %v1061 = vunpack.c.l.s4 1934713408
    %v1062 = vunpack.c.0.s8 %v1061
    %v1063 = vlaneseq
    %v1064 = vshrl.u32 %v1063, 7
    %v1065 = vsub.s32 %v1062, %v1064
    %v1066 = vrot.slane %v1052, %v1065
    %v1067 = vcombine.low %v1042, %v1050
    %v1068 = vcombine.high %v1042, %v1050
    %v1070 = vunpack.c.l.s4 1934713408
    %v1071 = vunpack.c.0.s8 %v1070
    %v1072 = vlaneseq
    %v1073 = vshrl.u32 %v1072, 7
    %v1074 = vsub.s32 %v1071, %v1073
    %v1075 = vrot.slane %v1067, %v1074
    %v1077 = vunpack.c.l.s4 1934713408
    %v1078 = vunpack.c.0.s8 %v1077
    %v1079 = vlaneseq
    %v1080 = vshrl.u32 %v1079, 7
    %v1081 = vsub.s32 %v1078, %v1080
    %v1082 = vrot.slane %v1068, %v1081
    %v1083 = vcombine.low %v1059, %v1075
    %v1084 = vcombine.high %v1059, %v1075
    %v1085 = vcombine.low %v1066, %v1082
    %v1086 = vcombine.high %v1066, %v1082
    %v1087 = vpack.c.bf16 %v1015, %v1015
    %v1088 = vpack.c.bf16 %v1016, %v1016
    %v1089 = vpack.c.bf16 %v1017, %v1017
    %v1090 = vpack.c.bf16 %v1018, %v1018
    %v1091 = vpack.c.bf16 %v1083, %v1083
    %v1092 = vpack.c.bf16 %v1084, %v1084
    %v1093 = vpack.c.bf16 %v1085, %v1085
    %v1094 = vpack.c.bf16 %v1086, %v1086
    %1095 = vst.msk [vmem:[#allocation3] sm:$0xf] %vm782, %v1087
    %1096 = vst.msk [vmem:[#allocation3 + $0x4] sm:$0xf] %vm782, %v1088
    %1097 = vst.msk [vmem:[#allocation3 + $0x8] sm:$0xf] %vm782, %v1089
    %1098 = vst.msk [vmem:[#allocation3 + $0xc] sm:$0xf] %vm782, %v1090
    %1099 = vst.msk [vmem:[#allocation3 + $0x10] sm:$0xf] %vm782, %v1091
    %1100 = vst.msk [vmem:[#allocation3 + $0x14] sm:$0xf] %vm782, %v1092
    %1101 = vst.msk [vmem:[#allocation3 + $0x18] sm:$0xf] %vm782, %v1093
    %1102 = vst.msk [vmem:[#allocation3 + $0x1c] sm:$0xf] %vm782, %v1094
    %v1103 = vld [vmem:[#allocation2] sm:$0xf]
    %v1104 = vld [vmem:[#allocation2 + $0x4] sm:$0xf]
    %v1105 = vld [vmem:[#allocation2 + $0x8] sm:$0xf]
    %v1106 = vld [vmem:[#allocation2 + $0xc] sm:$0xf]
    %v1107 = vld [vmem:[#allocation2 + $0x10] sm:$0xf]
    %v1108 = vld [vmem:[#allocation2 + $0x14] sm:$0xf]
    %v1109 = vld [vmem:[#allocation2 + $0x18] sm:$0xf]
    %v1110 = vld [vmem:[#allocation2 + $0x1c] sm:$0xf]
    %v1111 = vld [vmem:[#allocation3] sm:$0xf]
    %v1112 = vld [vmem:[#allocation3 + $0x4] sm:$0xf]
    %v1113 = vld [vmem:[#allocation3 + $0x8] sm:$0xf]
    %v1114 = vld [vmem:[#allocation3 + $0xc] sm:$0xf]
    %v1115 = vld [vmem:[#allocation3 + $0x10] sm:$0xf]
    %v1116 = vld [vmem:[#allocation3 + $0x14] sm:$0xf]
    %v1117 = vld [vmem:[#allocation3 + $0x18] sm:$0xf]
    %v1118 = vld [vmem:[#allocation3 + $0x1c] sm:$0xf]
    %vm1119 = vcmask 64512
    %v1121 = vsel %vm1119, %v456, 0
    %v1124 = vsel %vm1119, %v1103, 0
    %1126 = vmatprep.subr.bf16.mxu0 0
    %1127 = vmatpush1.bf16.xpose.msra.mxu0 %v1124
    %1128 = vmatprep.subr.bf16.mxu0 0
    %1129 = vmatpush1.bf16.xpose.msra.mxu0 0
    %1130 = vmatprep.subr.bf16.mxu0 0
    %1131 = vmatpush1.bf16.xpose.msra.mxu0 0
    %1132 = vmatprep.subr.bf16.mxu0 0
    %1133 = vmatpush1.bf16.xpose.msra.mxu0 0
    %1134 = vmatprep.subr.bf16.mxu0 0
    %1135 = vmatpush1.bf16.xpose.msra.mxu0 0
    %1136 = vmatprep.subr.bf16.mxu0 0
    %1137 = vmatpush1.bf16.xpose.msra.mxu0 0
    %1138 = vmatprep.subr.bf16.mxu0 0
    %1139 = vmatpush1.bf16.xpose.msra.mxu0 0
    %1140 = vmatprep.subr.bf16.mxu0 0
    %1141 = vmatpush1.bf16.xpose.msra.mxu0 0
    %1142 = vmatprep.subr.bf16.mxu0 0
    %1143 = vmatpush1.bf16.xpose.msra.mxu0 0
    %1144 = vmatprep.subr.bf16.mxu0 0
    %1145 = vmatpush1.bf16.xpose.msra.mxu0 0
    %1146 = vmatprep.subr.bf16.mxu0 0
    %1147 = vmatpush1.bf16.xpose.msra.mxu0 0
    %1148 = vmatprep.subr.bf16.mxu0 0
    %1149 = vmatpush1.bf16.xpose.msra.mxu0 0
    %1150 = vmatprep.subr.bf16.mxu0 0
    %1151 = vmatpush1.bf16.xpose.msra.mxu0 0
    %1152 = vmatprep.subr.bf16.mxu0 0
    %1153 = vmatpush1.bf16.xpose.msra.mxu0 0
    %1154 = vmatprep.subr.bf16.mxu0 0
    %1155 = vmatpush1.bf16.xpose.msra.mxu0 0
    %1156 = vmatprep.subr.bf16.mxu0 0
    %1157 = vmatpush1.bf16.xpose.msra.mxu0 0
    %1158 = vmatprep.mubr.bf16.mxu0 0
    %1159 = vmatmul.mubr.bf16.gmra.mrb[0].mxu0 %v1121
    %v1160 = vpop.f32.mrb[0].mxu0
    %v1161 = vadd.f32 0.0, %v1160
    %v1162 = vpop.f32.mrb[0].mxu0
    %v1163 = vpop.f32.mrb[0].mxu0
    %v1164 = vpop.f32.mrb[0].mxu0
    %1165 = vdwg.mxu0
    %v1167 = vsel %vm1119, %v457, 0
    %v1170 = vsel %vm1119, %v1104, 0
    %1172 = vmatprep.subr.bf16.mxu0 0
    %1173 = vmatpush1.bf16.xpose.msra.mxu0 %v1170
    %1174 = vmatprep.subr.bf16.mxu0 0
    %1175 = vmatpush1.bf16.xpose.msra.mxu0 0
    %1176 = vmatprep.subr.bf16.mxu0 0
    %1177 = vmatpush1.bf16.xpose.msra.mxu0 0
    %1178 = vmatprep.subr.bf16.mxu0 0
    %1179 = vmatpush1.bf16.xpose.msra.mxu0 0
    %1180 = vmatprep.subr.bf16.mxu0 0
    %1181 = vmatpush1.bf16.xpose.msra.mxu0 0
    %1182 = vmatprep.subr.bf16.mxu0 0
    %1183 = vmatpush1.bf16.xpose.msra.mxu0 0
    %1184 = vmatprep.subr.bf16.mxu0 0
    %1185 = vmatpush1.bf16.xpose.msra.mxu0 0
    %1186 = vmatprep.subr.bf16.mxu0 0
    %1187 = vmatpush1.bf16.xpose.msra.mxu0 0
    %1188 = vmatprep.subr.bf16.mxu0 0
    %1189 = vmatpush1.bf16.xpose.msra.mxu0 0
    %1190 = vmatprep.subr.bf16.mxu0 0
    %1191 = vmatpush1.bf16.xpose.msra.mxu0 0
    %1192 = vmatprep.subr.bf16.mxu0 0
    %1193 = vmatpush1.bf16.xpose.msra.mxu0 0
    %1194 = vmatprep.subr.bf16.mxu0 0
    %1195 = vmatpush1.bf16.xpose.msra.mxu0 0
    %1196 = vmatprep.subr.bf16.mxu0 0
    %1197 = vmatpush1.bf16.xpose.msra.mxu0 0
    %1198 = vmatprep.subr.bf16.mxu0 0
    %1199 = vmatpush1.bf16.xpose.msra.mxu0 0
    %1200 = vmatprep.subr.bf16.mxu0 0
    %1201 = vmatpush1.bf16.xpose.msra.mxu0 0
    %1202 = vmatprep.subr.bf16.mxu0 0
    %1203 = vmatpush1.bf16.xpose.msra.mxu0 0
    %1204 = vmatprep.mubr.bf16.mxu0 0
    %1205 = vmatmul.mubr.bf16.gmra.mrb[0].mxu0 %v1167
    %v1206 = vpop.f32.mrb[0].mxu0
    %v1207 = vadd.f32 0.0, %v1206
    %v1208 = vpop.f32.mrb[0].mxu0
    %v1209 = vpop.f32.mrb[0].mxu0
    %v1210 = vpop.f32.mrb[0].mxu0
    %1211 = vdwg.mxu0
    %v1213 = vsel %vm1119, %v458, 0
    %v1216 = vsel %vm1119, %v1105, 0
    %1218 = vmatprep.subr.bf16.mxu0 0
    %1219 = vmatpush1.bf16.xpose.msra.mxu0 %v1216
    %1220 = vmatprep.subr.bf16.mxu0 0
    %1221 = vmatpush1.bf16.xpose.msra.mxu0 0
    %1222 = vmatprep.subr.bf16.mxu0 0
    %1223 = vmatpush1.bf16.xpose.msra.mxu0 0
    %1224 = vmatprep.subr.bf16.mxu0 0
    %1225 = vmatpush1.bf16.xpose.msra.mxu0 0
    %1226 = vmatprep.subr.bf16.mxu0 0
    %1227 = vmatpush1.bf16.xpose.msra.mxu0 0
    %1228 = vmatprep.subr.bf16.mxu0 0
    %1229 = vmatpush1.bf16.xpose.msra.mxu0 0
    %1230 = vmatprep.subr.bf16.mxu0 0
    %1231 = vmatpush1.bf16.xpose.msra.mxu0 0
    %1232 = vmatprep.subr.bf16.mxu0 0
    %1233 = vmatpush1.bf16.xpose.msra.mxu0 0
    %1234 = vmatprep.subr.bf16.mxu0 0
    %1235 = vmatpush1.bf16.xpose.msra.mxu0 0
    %1236 = vmatprep.subr.bf16.mxu0 0
    %1237 = vmatpush1.bf16.xpose.msra.mxu0 0
    %1238 = vmatprep.subr.bf16.mxu0 0
    %1239 = vmatpush1.bf16.xpose.msra.mxu0 0
    %1240 = vmatprep.subr.bf16.mxu0 0
    %1241 = vmatpush1.bf16.xpose.msra.mxu0 0
    %1242 = vmatprep.subr.bf16.mxu0 0
    %1243 = vmatpush1.bf16.xpose.msra.mxu0 0
    %1244 = vmatprep.subr.bf16.mxu0 0
    %1245 = vmatpush1.bf16.xpose.msra.mxu0 0
    %1246 = vmatprep.subr.bf16.mxu0 0
    %1247 = vmatpush1.bf16.xpose.msra.mxu0 0
    %1248 = vmatprep.subr.bf16.mxu0 0
    %1249 = vmatpush1.bf16.xpose.msra.mxu0 0
    %1250 = vmatprep.mubr.bf16.mxu0 0
    %1251 = vmatmul.mubr.bf16.gmra.mrb[0].mxu0 %v1213
    %v1252 = vpop.f32.mrb[0].mxu0
    %v1253 = vadd.f32 0.0, %v1252
    %v1254 = vpop.f32.mrb[0].mxu0
    %v1255 = vpop.f32.mrb[0].mxu0
    %v1256 = vpop.f32.mrb[0].mxu0
    %1257 = vdwg.mxu0
    %v1259 = vsel %vm1119, %v459, 0
    %v1262 = vsel %vm1119, %v1106, 0
    %1264 = vmatprep.subr.bf16.mxu0 0
    %1265 = vmatpush1.bf16.xpose.msra.mxu0 %v1262
    %1266 = vmatprep.subr.bf16.mxu0 0
    %1267 = vmatpush1.bf16.xpose.msra.mxu0 0
    %1268 = vmatprep.subr.bf16.mxu0 0
    %1269 = vmatpush1.bf16.xpose.msra.mxu0 0
    %1270 = vmatprep.subr.bf16.mxu0 0
    %1271 = vmatpush1.bf16.xpose.msra.mxu0 0
    %1272 = vmatprep.subr.bf16.mxu0 0
    %1273 = vmatpush1.bf16.xpose.msra.mxu0 0
    %1274 = vmatprep.subr.bf16.mxu0 0
    %1275 = vmatpush1.bf16.xpose.msra.mxu0 0
    %1276 = vmatprep.subr.bf16.mxu0 0
    %1277 = vmatpush1.bf16.xpose.msra.mxu0 0
    %1278 = vmatprep.subr.bf16.mxu0 0
    %1279 = vmatpush1.bf16.xpose.msra.mxu0 0
    %1280 = vmatprep.subr.bf16.mxu0 0
    %1281 = vmatpush1.bf16.xpose.msra.mxu0 0
    %1282 = vmatprep.subr.bf16.mxu0 0
    %1283 = vmatpush1.bf16.xpose.msra.mxu0 0
    %1284 = vmatprep.subr.bf16.mxu0 0
    %1285 = vmatpush1.bf16.xpose.msra.mxu0 0
    %1286 = vmatprep.subr.bf16.mxu0 0
    %1287 = vmatpush1.bf16.xpose.msra.mxu0 0
    %1288 = vmatprep.subr.bf16.mxu0 0
    %1289 = vmatpush1.bf16.xpose.msra.mxu0 0
    %1290 = vmatprep.subr.bf16.mxu0 0
    %1291 = vmatpush1.bf16.xpose.msra.mxu0 0
    %1292 = vmatprep.subr.bf16.mxu0 0
    %1293 = vmatpush1.bf16.xpose.msra.mxu0 0
    %1294 = vmatprep.subr.bf16.mxu0 0
    %1295 = vmatpush1.bf16.xpose.msra.mxu0 0
    %1296 = vmatprep.mubr.bf16.mxu0 0
    %1297 = vmatmul.mubr.bf16.gmra.mrb[0].mxu0 %v1259
    %v1298 = vpop.f32.mrb[0].mxu0
    %v1299 = vadd.f32 0.0, %v1298
    %v1300 = vpop.f32.mrb[0].mxu0
    %v1301 = vpop.f32.mrb[0].mxu0
    %v1302 = vpop.f32.mrb[0].mxu0
    %1303 = vdwg.mxu0
    %v1305 = vsel %vm1119, %v460, 0
    %v1308 = vsel %vm1119, %v1107, 0
    %1310 = vmatprep.subr.bf16.mxu0 0
    %1311 = vmatpush1.bf16.xpose.msra.mxu0 %v1308
    %1312 = vmatprep.subr.bf16.mxu0 0
    %1313 = vmatpush1.bf16.xpose.msra.mxu0 0
    %1314 = vmatprep.subr.bf16.mxu0 0
    %1315 = vmatpush1.bf16.xpose.msra.mxu0 0
    %1316 = vmatprep.subr.bf16.mxu0 0
    %1317 = vmatpush1.bf16.xpose.msra.mxu0 0
    %1318 = vmatprep.subr.bf16.mxu0 0
    %1319 = vmatpush1.bf16.xpose.msra.mxu0 0
    %1320 = vmatprep.subr.bf16.mxu0 0
    %1321 = vmatpush1.bf16.xpose.msra.mxu0 0
    %1322 = vmatprep.subr.bf16.mxu0 0
    %1323 = vmatpush1.bf16.xpose.msra.mxu0 0
    %1324 = vmatprep.subr.bf16.mxu0 0
    %1325 = vmatpush1.bf16.xpose.msra.mxu0 0
    %1326 = vmatprep.subr.bf16.mxu0 0
    %1327 = vmatpush1.bf16.xpose.msra.mxu0 0
    %1328 = vmatprep.subr.bf16.mxu0 0
    %1329 = vmatpush1.bf16.xpose.msra.mxu0 0
    %1330 = vmatprep.subr.bf16.mxu0 0
    %1331 = vmatpush1.bf16.xpose.msra.mxu0 0
    %1332 = vmatprep.subr.bf16.mxu0 0
    %1333 = vmatpush1.bf16.xpose.msra.mxu0 0
    %1334 = vmatprep.subr.bf16.mxu0 0
    %1335 = vmatpush1.bf16.xpose.msra.mxu0 0
    %1336 = vmatprep.subr.bf16.mxu0 0
    %1337 = vmatpush1.bf16.xpose.msra.mxu0 0
    %1338 = vmatprep.subr.bf16.mxu0 0
    %1339 = vmatpush1.bf16.xpose.msra.mxu0 0
    %1340 = vmatprep.subr.bf16.mxu0 0
    %1341 = vmatpush1.bf16.xpose.msra.mxu0 0
    %1342 = vmatprep.mubr.bf16.mxu0 0
    %1343 = vmatmul.mubr.bf16.gmra.mrb[0].mxu0 %v1305
    %v1344 = vpop.f32.mrb[0].mxu0
    %v1345 = vadd.f32 0.0, %v1344
    %v1346 = vpop.f32.mrb[0].mxu0
    %v1347 = vpop.f32.mrb[0].mxu0
    %v1348 = vpop.f32.mrb[0].mxu0
    %1349 = vdwg.mxu0
    %v1351 = vsel %vm1119, %v461, 0
    %v1354 = vsel %vm1119, %v1108, 0
    %1356 = vmatprep.subr.bf16.mxu0 0
    %1357 = vmatpush1.bf16.xpose.msra.mxu0 %v1354
    %1358 = vmatprep.subr.bf16.mxu0 0
    %1359 = vmatpush1.bf16.xpose.msra.mxu0 0
    %1360 = vmatprep.subr.bf16.mxu0 0
    %1361 = vmatpush1.bf16.xpose.msra.mxu0 0
    %1362 = vmatprep.subr.bf16.mxu0 0
    %1363 = vmatpush1.bf16.xpose.msra.mxu0 0
    %1364 = vmatprep.subr.bf16.mxu0 0
    %1365 = vmatpush1.bf16.xpose.msra.mxu0 0
    %1366 = vmatprep.subr.bf16.mxu0 0
    %1367 = vmatpush1.bf16.xpose.msra.mxu0 0
    %1368 = vmatprep.subr.bf16.mxu0 0
    %1369 = vmatpush1.bf16.xpose.msra.mxu0 0
    %1370 = vmatprep.subr.bf16.mxu0 0
    %1371 = vmatpush1.bf16.xpose.msra.mxu0 0
    %1372 = vmatprep.subr.bf16.mxu0 0
    %1373 = vmatpush1.bf16.xpose.msra.mxu0 0
    %1374 = vmatprep.subr.bf16.mxu0 0
    %1375 = vmatpush1.bf16.xpose.msra.mxu0 0
    %1376 = vmatprep.subr.bf16.mxu0 0
    %1377 = vmatpush1.bf16.xpose.msra.mxu0 0
    %1378 = vmatprep.subr.bf16.mxu0 0
    %1379 = vmatpush1.bf16.xpose.msra.mxu0 0
    %1380 = vmatprep.subr.bf16.mxu0 0
    %1381 = vmatpush1.bf16.xpose.msra.mxu0 0
    %1382 = vmatprep.subr.bf16.mxu0 0
    %1383 = vmatpush1.bf16.xpose.msra.mxu0 0
    %1384 = vmatprep.subr.bf16.mxu0 0
    %1385 = vmatpush1.bf16.xpose.msra.mxu0 0
    %1386 = vmatprep.subr.bf16.mxu0 0
    %1387 = vmatpush1.bf16.xpose.msra.mxu0 0
    %1388 = vmatprep.mubr.bf16.mxu0 0
    %1389 = vmatmul.mubr.bf16.gmra.mrb[0].mxu0 %v1351
    %v1390 = vpop.f32.mrb[0].mxu0
    %v1391 = vadd.f32 0.0, %v1390
    %v1392 = vpop.f32.mrb[0].mxu0
    %v1393 = vpop.f32.mrb[0].mxu0
    %v1394 = vpop.f32.mrb[0].mxu0
    %1395 = vdwg.mxu0
    %v1397 = vsel %vm1119, %v462, 0
    %v1400 = vsel %vm1119, %v1109, 0
    %1402 = vmatprep.subr.bf16.mxu0 0
    %1403 = vmatpush1.bf16.xpose.msra.mxu0 %v1400
    %1404 = vmatprep.subr.bf16.mxu0 0
    %1405 = vmatpush1.bf16.xpose.msra.mxu0 0
    %1406 = vmatprep.subr.bf16.mxu0 0
    %1407 = vmatpush1.bf16.xpose.msra.mxu0 0
    %1408 = vmatprep.subr.bf16.mxu0 0
    %1409 = vmatpush1.bf16.xpose.msra.mxu0 0
    %1410 = vmatprep.subr.bf16.mxu0 0
    %1411 = vmatpush1.bf16.xpose.msra.mxu0 0
    %1412 = vmatprep.subr.bf16.mxu0 0
    %1413 = vmatpush1.bf16.xpose.msra.mxu0 0
    %1414 = vmatprep.subr.bf16.mxu0 0
    %1415 = vmatpush1.bf16.xpose.msra.mxu0 0
    %1416 = vmatprep.subr.bf16.mxu0 0
    %1417 = vmatpush1.bf16.xpose.msra.mxu0 0
    %1418 = vmatprep.subr.bf16.mxu0 0
    %1419 = vmatpush1.bf16.xpose.msra.mxu0 0
    %1420 = vmatprep.subr.bf16.mxu0 0
    %1421 = vmatpush1.bf16.xpose.msra.mxu0 0
    %1422 = vmatprep.subr.bf16.mxu0 0
    %1423 = vmatpush1.bf16.xpose.msra.mxu0 0
    %1424 = vmatprep.subr.bf16.mxu0 0
    %1425 = vmatpush1.bf16.xpose.msra.mxu0 0
    %1426 = vmatprep.subr.bf16.mxu0 0
    %1427 = vmatpush1.bf16.xpose.msra.mxu0 0
    %1428 = vmatprep.subr.bf16.mxu0 0
    %1429 = vmatpush1.bf16.xpose.msra.mxu0 0
    %1430 = vmatprep.subr.bf16.mxu0 0
    %1431 = vmatpush1.bf16.xpose.msra.mxu0 0
    %1432 = vmatprep.subr.bf16.mxu0 0
    %1433 = vmatpush1.bf16.xpose.msra.mxu0 0
    %1434 = vmatprep.mubr.bf16.mxu0 0
    %1435 = vmatmul.mubr.bf16.gmra.mrb[0].mxu0 %v1397
    %v1436 = vpop.f32.mrb[0].mxu0
    %v1437 = vadd.f32 0.0, %v1436
    %v1438 = vpop.f32.mrb[0].mxu0
    %v1439 = vpop.f32.mrb[0].mxu0
    %v1440 = vpop.f32.mrb[0].mxu0
    %1441 = vdwg.mxu0
    %v1443 = vsel %vm1119, %v463, 0
    %v1446 = vsel %vm1119, %v1110, 0
    %1448 = vmatprep.subr.bf16.mxu0 0
    %1449 = vmatpush1.bf16.xpose.msra.mxu0 %v1446
    %1450 = vmatprep.subr.bf16.mxu0 0
    %1451 = vmatpush1.bf16.xpose.msra.mxu0 0
    %1452 = vmatprep.subr.bf16.mxu0 0
    %1453 = vmatpush1.bf16.xpose.msra.mxu0 0
    %1454 = vmatprep.subr.bf16.mxu0 0
    %1455 = vmatpush1.bf16.xpose.msra.mxu0 0
    %1456 = vmatprep.subr.bf16.mxu0 0
    %1457 = vmatpush1.bf16.xpose.msra.mxu0 0
    %1458 = vmatprep.subr.bf16.mxu0 0
    %1459 = vmatpush1.bf16.xpose.msra.mxu0 0
    %1460 = vmatprep.subr.bf16.mxu0 0
    %1461 = vmatpush1.bf16.xpose.msra.mxu0 0
    %1462 = vmatprep.subr.bf16.mxu0 0
    %1463 = vmatpush1.bf16.xpose.msra.mxu0 0
    %1464 = vmatprep.subr.bf16.mxu0 0
    %1465 = vmatpush1.bf16.xpose.msra.mxu0 0
    %1466 = vmatprep.subr.bf16.mxu0 0
    %1467 = vmatpush1.bf16.xpose.msra.mxu0 0
    %1468 = vmatprep.subr.bf16.mxu0 0
    %1469 = vmatpush1.bf16.xpose.msra.mxu0 0
    %1470 = vmatprep.subr.bf16.mxu0 0
    %1471 = vmatpush1.bf16.xpose.msra.mxu0 0
    %1472 = vmatprep.subr.bf16.mxu0 0
    %1473 = vmatpush1.bf16.xpose.msra.mxu0 0
    %1474 = vmatprep.subr.bf16.mxu0 0
    %1475 = vmatpush1.bf16.xpose.msra.mxu0 0
    %1476 = vmatprep.subr.bf16.mxu0 0
    %1477 = vmatpush1.bf16.xpose.msra.mxu0 0
    %1478 = vmatprep.subr.bf16.mxu0 0
    %1479 = vmatpush1.bf16.xpose.msra.mxu0 0
    %1480 = vmatprep.mubr.bf16.mxu0 0
    %1481 = vmatmul.mubr.bf16.gmra.mrb[0].mxu0 %v1443
    %v1482 = vpop.f32.mrb[0].mxu0
    %v1483 = vadd.f32 0.0, %v1482
    %v1484 = vpop.f32.mrb[0].mxu0
    %v1485 = vpop.f32.mrb[0].mxu0
    %v1486 = vpop.f32.mrb[0].mxu0
    %1487 = vdwg.mxu0
    %v1488 = vsel %vm1119, %v1161, -inf
    %1489 = vmax.xlane.f32.xlu0 %v1488
    %v1490 = vpop.xlane.xlu0 %1489
    %v1491 = vsel %vm1119, %v1207, -inf
    %1492 = vmax.xlane.f32.xlu0 %v1491
    %v1493 = vpop.xlane.xlu0 %1492
    %v1494 = vsel %vm1119, %v1253, -inf
    %1495 = vmax.xlane.f32.xlu0 %v1494
    %v1496 = vpop.xlane.xlu0 %1495
    %v1497 = vsel %vm1119, %v1299, -inf
    %1498 = vmax.xlane.f32.xlu0 %v1497
    %v1499 = vpop.xlane.xlu0 %1498
    %v1500 = vsel %vm1119, %v1345, -inf
    %1501 = vmax.xlane.f32.xlu0 %v1500
    %v1502 = vpop.xlane.xlu0 %1501
    %v1503 = vsel %vm1119, %v1391, -inf
    %1504 = vmax.xlane.f32.xlu0 %v1503
    %v1505 = vpop.xlane.xlu0 %1504
    %v1506 = vsel %vm1119, %v1437, -inf
    %1507 = vmax.xlane.f32.xlu0 %v1506
    %v1508 = vpop.xlane.xlu0 %1507
    %v1509 = vsel %vm1119, %v1483, -inf
    %1510 = vmax.xlane.f32.xlu0 %v1509
    %v1511 = vpop.xlane.xlu0 %1510
    %v1512 = vsub.f32 -inf, %v1490
    %v1513 = vsub.f32 -inf, %v1493
    %v1514 = vsub.f32 -inf, %v1496
    %v1515 = vsub.f32 -inf, %v1499
    %v1516 = vsub.f32 -inf, %v1502
    %v1517 = vsub.f32 -inf, %v1505
    %v1518 = vsub.f32 -inf, %v1508
    %v1519 = vsub.f32 -inf, %v1511
    %v1520 = vmul.f32 %v1512, 1.442695
    %v1521 = vpow.pop %v1520
    %v1522 = vmul.f32 %v1513, 1.442695
    %v1523 = vpow.pop %v1522
    %v1524 = vmul.f32 %v1514, 1.442695
    %v1525 = vpow.pop %v1524
    %v1526 = vmul.f32 %v1515, 1.442695
    %v1527 = vpow.pop %v1526
    %v1528 = vmul.f32 %v1516, 1.442695
    %v1529 = vpow.pop %v1528
    %v1530 = vmul.f32 %v1517, 1.442695
    %v1531 = vpow.pop %v1530
    %v1532 = vmul.f32 %v1518, 1.442695
    %v1533 = vpow.pop %v1532
    %v1534 = vmul.f32 %v1519, 1.442695
    %v1535 = vpow.pop %v1534
    %v1536 = vsub.f32 %v1161, %v1490
    %v1537 = vsub.f32 %v1207, %v1493
    %v1538 = vsub.f32 %v1253, %v1496
    %v1539 = vsub.f32 %v1299, %v1499
    %v1540 = vsub.f32 %v1345, %v1502
    %v1541 = vsub.f32 %v1391, %v1505
    %v1542 = vsub.f32 %v1437, %v1508
    %v1543 = vsub.f32 %v1483, %v1511
    %v1544 = vmul.f32 %v1536, 1.442695
    %v1545 = vpow.pop %v1544
    %v1546 = vmul.f32 %v1537, 1.442695
    %v1547 = vpow.pop %v1546
    %v1548 = vmul.f32 %v1538, 1.442695
    %v1549 = vpow.pop %v1548
    %v1550 = vmul.f32 %v1539, 1.442695
    %v1551 = vpow.pop %v1550
    %v1552 = vmul.f32 %v1540, 1.442695
    %v1553 = vpow.pop %v1552
    %v1554 = vmul.f32 %v1541, 1.442695
    %v1555 = vpow.pop %v1554
    %v1556 = vmul.f32 %v1542, 1.442695
    %v1557 = vpow.pop %v1556
    %v1558 = vmul.f32 %v1543, 1.442695
    %v1559 = vpow.pop %v1558
    %v1560 = vmul.f32 %v1521, 0.0
    %v1561 = vmul.f32 %v1523, 0.0
    %v1562 = vmul.f32 %v1525, 0.0
    %v1563 = vmul.f32 %v1527, 0.0
    %v1564 = vmul.f32 %v1529, 0.0
    %v1565 = vmul.f32 %v1531, 0.0
    %v1566 = vmul.f32 %v1533, 0.0
    %v1567 = vmul.f32 %v1535, 0.0
    %v1568 = vsel %vm1119, %v1545, 0.0
    %1569 = vadd.xlane.f32.xlu0 %v1568
    %v1570 = vpop.xlane.xlu0 %1569
    %v1571 = vsel %vm1119, %v1547, 0.0
    %1572 = vadd.xlane.f32.xlu0 %v1571
    %v1573 = vpop.xlane.xlu0 %1572
    %v1574 = vsel %vm1119, %v1549, 0.0
    %1575 = vadd.xlane.f32.xlu0 %v1574
    %v1576 = vpop.xlane.xlu0 %1575
    %v1577 = vsel %vm1119, %v1551, 0.0
    %1578 = vadd.xlane.f32.xlu0 %v1577
    %v1579 = vpop.xlane.xlu0 %1578
    %v1580 = vsel %vm1119, %v1553, 0.0
    %1581 = vadd.xlane.f32.xlu0 %v1580
    %v1582 = vpop.xlane.xlu0 %1581
    %v1583 = vsel %vm1119, %v1555, 0.0
    %1584 = vadd.xlane.f32.xlu0 %v1583
    %v1585 = vpop.xlane.xlu0 %1584
    %v1586 = vsel %vm1119, %v1557, 0.0
    %1587 = vadd.xlane.f32.xlu0 %v1586
    %v1588 = vpop.xlane.xlu0 %1587
    %v1589 = vsel %vm1119, %v1559, 0.0
    %1590 = vadd.xlane.f32.xlu0 %v1589
    %v1591 = vpop.xlane.xlu0 %1590
    %v1592 = vadd.f32 %v1560, %v1570
    %v1593 = vadd.f32 %v1561, %v1573
    %v1594 = vadd.f32 %v1562, %v1576
    %v1595 = vadd.f32 %v1563, %v1579
    %v1596 = vadd.f32 %v1564, %v1582
    %v1597 = vadd.f32 %v1565, %v1585
    %v1598 = vadd.f32 %v1566, %v1588
    %v1599 = vadd.f32 %v1567, %v1591
    %v1600 = vpack.c.bf16 %v1545, %v1545
    %v1601 = vpack.c.bf16 %v1547, %v1547
    %v1602 = vpack.c.bf16 %v1549, %v1549
    %v1603 = vpack.c.bf16 %v1551, %v1551
    %v1604 = vpack.c.bf16 %v1553, %v1553
    %v1605 = vpack.c.bf16 %v1555, %v1555
    %v1606 = vpack.c.bf16 %v1557, %v1557
    %v1607 = vpack.c.bf16 %v1559, %v1559
    %v1609 = vsel %vm1119, %v1600, 0
    %vm1611 = vcmask 1043456
    %v1613 = vsel %vm1611, %v1111, 0
    %1615 = vmatprep.subr.bf16.mxu0 0
    %1616 = vmatpush1.bf16.msra.mxu0 %v1613
    %1617 = vmatprep.subr.bf16.mxu0 0
    %1618 = vmatpush1.bf16.msra.mxu0 0
    %1619 = vmatprep.subr.bf16.mxu0 0
    %1620 = vmatpush1.bf16.msra.mxu0 0
    %1621 = vmatprep.subr.bf16.mxu0 0
    %1622 = vmatpush1.bf16.msra.mxu0 0
    %1623 = vmatprep.subr.bf16.mxu0 0
    %1624 = vmatpush1.bf16.msra.mxu0 0
    %1625 = vmatprep.subr.bf16.mxu0 0
    %1626 = vmatpush1.bf16.msra.mxu0 0
    %1627 = vmatprep.subr.bf16.mxu0 0
    %1628 = vmatpush1.bf16.msra.mxu0 0
    %1629 = vmatprep.subr.bf16.mxu0 0
    %1630 = vmatpush1.bf16.msra.mxu0 0
    %1631 = vmatprep.subr.bf16.mxu0 0
    %1632 = vmatpush1.bf16.msra.mxu0 0
    %1633 = vmatprep.subr.bf16.mxu0 0
    %1634 = vmatpush1.bf16.msra.mxu0 0
    %1635 = vmatprep.subr.bf16.mxu0 0
    %1636 = vmatpush1.bf16.msra.mxu0 0
    %1637 = vmatprep.subr.bf16.mxu0 0
    %1638 = vmatpush1.bf16.msra.mxu0 0
    %1639 = vmatprep.subr.bf16.mxu0 0
    %1640 = vmatpush1.bf16.msra.mxu0 0
    %1641 = vmatprep.subr.bf16.mxu0 0
    %1642 = vmatpush1.bf16.msra.mxu0 0
    %1643 = vmatprep.subr.bf16.mxu0 0
    %1644 = vmatpush1.bf16.msra.mxu0 0
    %1645 = vmatprep.subr.bf16.mxu0 0
    %1646 = vmatpush1.bf16.msra.mxu0 0
    %1647 = vmatprep.mubr.bf16.mxu0 0
    %1648 = vmatmul.mubr.bf16.gmra.mrb[0].mxu0 %v1609
    %v1649 = vpop.f32.mrb[0].mxu0
    %v1650 = vadd.f32 0.0, %v1649
    %v1651 = vpop.f32.mrb[0].mxu0
    %v1652 = vpop.f32.mrb[0].mxu0
    %v1653 = vpop.f32.mrb[0].mxu0
    %1654 = vdwg.mxu0
    %v1656 = vsel %vm1119, %v1601, 0
    %v1659 = vsel %vm1611, %v1112, 0
    %1661 = vmatprep.subr.bf16.mxu0 0
    %1662 = vmatpush1.bf16.msra.mxu0 %v1659
    %1663 = vmatprep.subr.bf16.mxu0 0
    %1664 = vmatpush1.bf16.msra.mxu0 0
    %1665 = vmatprep.subr.bf16.mxu0 0
    %1666 = vmatpush1.bf16.msra.mxu0 0
    %1667 = vmatprep.subr.bf16.mxu0 0
    %1668 = vmatpush1.bf16.msra.mxu0 0
    %1669 = vmatprep.subr.bf16.mxu0 0
    %1670 = vmatpush1.bf16.msra.mxu0 0
    %1671 = vmatprep.subr.bf16.mxu0 0
    %1672 = vmatpush1.bf16.msra.mxu0 0
    %1673 = vmatprep.subr.bf16.mxu0 0
    %1674 = vmatpush1.bf16.msra.mxu0 0
    %1675 = vmatprep.subr.bf16.mxu0 0
    %1676 = vmatpush1.bf16.msra.mxu0 0
    %1677 = vmatprep.subr.bf16.mxu0 0
    %1678 = vmatpush1.bf16.msra.mxu0 0
    %1679 = vmatprep.subr.bf16.mxu0 0
    %1680 = vmatpush1.bf16.msra.mxu0 0
    %1681 = vmatprep.subr.bf16.mxu0 0
    %1682 = vmatpush1.bf16.msra.mxu0 0
    %1683 = vmatprep.subr.bf16.mxu0 0
    %1684 = vmatpush1.bf16.msra.mxu0 0
    %1685 = vmatprep.subr.bf16.mxu0 0
    %1686 = vmatpush1.bf16.msra.mxu0 0
    %1687 = vmatprep.subr.bf16.mxu0 0
    %1688 = vmatpush1.bf16.msra.mxu0 0
    %1689 = vmatprep.subr.bf16.mxu0 0
    %1690 = vmatpush1.bf16.msra.mxu0 0
    %1691 = vmatprep.subr.bf16.mxu0 0
    %1692 = vmatpush1.bf16.msra.mxu0 0
    %1693 = vmatprep.mubr.bf16.mxu0 0
    %1694 = vmatmul.mubr.bf16.gmra.mrb[0].mxu0 %v1656
    %v1695 = vpop.f32.mrb[0].mxu0
    %v1696 = vadd.f32 0.0, %v1695
    %v1697 = vpop.f32.mrb[0].mxu0
    %v1698 = vpop.f32.mrb[0].mxu0
    %v1699 = vpop.f32.mrb[0].mxu0
    %1700 = vdwg.mxu0
    %v1702 = vsel %vm1119, %v1602, 0
    %v1705 = vsel %vm1611, %v1113, 0
    %1707 = vmatprep.subr.bf16.mxu0 0
    %1708 = vmatpush1.bf16.msra.mxu0 %v1705
    %1709 = vmatprep.subr.bf16.mxu0 0
    %1710 = vmatpush1.bf16.msra.mxu0 0
    %1711 = vmatprep.subr.bf16.mxu0 0
    %1712 = vmatpush1.bf16.msra.mxu0 0
    %1713 = vmatprep.subr.bf16.mxu0 0
    %1714 = vmatpush1.bf16.msra.mxu0 0
    %1715 = vmatprep.subr.bf16.mxu0 0
    %1716 = vmatpush1.bf16.msra.mxu0 0
    %1717 = vmatprep.subr.bf16.mxu0 0
    %1718 = vmatpush1.bf16.msra.mxu0 0
    %1719 = vmatprep.subr.bf16.mxu0 0
    %1720 = vmatpush1.bf16.msra.mxu0 0
    %1721 = vmatprep.subr.bf16.mxu0 0
    %1722 = vmatpush1.bf16.msra.mxu0 0
    %1723 = vmatprep.subr.bf16.mxu0 0
    %1724 = vmatpush1.bf16.msra.mxu0 0
    %1725 = vmatprep.subr.bf16.mxu0 0
    %1726 = vmatpush1.bf16.msra.mxu0 0
    %1727 = vmatprep.subr.bf16.mxu0 0
    %1728 = vmatpush1.bf16.msra.mxu0 0
    %1729 = vmatprep.subr.bf16.mxu0 0
    %1730 = vmatpush1.bf16.msra.mxu0 0
    %1731 = vmatprep.subr.bf16.mxu0 0
    %1732 = vmatpush1.bf16.msra.mxu0 0
    %1733 = vmatprep.subr.bf16.mxu0 0
    %1734 = vmatpush1.bf16.msra.mxu0 0
    %1735 = vmatprep.subr.bf16.mxu0 0
    %1736 = vmatpush1.bf16.msra.mxu0 0
    %1737 = vmatprep.subr.bf16.mxu0 0
    %1738 = vmatpush1.bf16.msra.mxu0 0
    %1739 = vmatprep.mubr.bf16.mxu0 0
    %1740 = vmatmul.mubr.bf16.gmra.mrb[0].mxu0 %v1702
    %v1741 = vpop.f32.mrb[0].mxu0
    %v1742 = vadd.f32 0.0, %v1741
    %v1743 = vpop.f32.mrb[0].mxu0
    %v1744 = vpop.f32.mrb[0].mxu0
    %v1745 = vpop.f32.mrb[0].mxu0
    %1746 = vdwg.mxu0
    %v1748 = vsel %vm1119, %v1603, 0
    %v1751 = vsel %vm1611, %v1114, 0
    %1753 = vmatprep.subr.bf16.mxu0 0
    %1754 = vmatpush1.bf16.msra.mxu0 %v1751
    %1755 = vmatprep.subr.bf16.mxu0 0
    %1756 = vmatpush1.bf16.msra.mxu0 0
    %1757 = vmatprep.subr.bf16.mxu0 0
    %1758 = vmatpush1.bf16.msra.mxu0 0
    %1759 = vmatprep.subr.bf16.mxu0 0
    %1760 = vmatpush1.bf16.msra.mxu0 0
    %1761 = vmatprep.subr.bf16.mxu0 0
    %1762 = vmatpush1.bf16.msra.mxu0 0
    %1763 = vmatprep.subr.bf16.mxu0 0
    %1764 = vmatpush1.bf16.msra.mxu0 0
    %1765 = vmatprep.subr.bf16.mxu0 0
    %1766 = vmatpush1.bf16.msra.mxu0 0
    %1767 = vmatprep.subr.bf16.mxu0 0
    %1768 = vmatpush1.bf16.msra.mxu0 0
    %1769 = vmatprep.subr.bf16.mxu0 0
    %1770 = vmatpush1.bf16.msra.mxu0 0
    %1771 = vmatprep.subr.bf16.mxu0 0
    %1772 = vmatpush1.bf16.msra.mxu0 0
    %1773 = vmatprep.subr.bf16.mxu0 0
    %1774 = vmatpush1.bf16.msra.mxu0 0
    %1775 = vmatprep.subr.bf16.mxu0 0
    %1776 = vmatpush1.bf16.msra.mxu0 0
    %1777 = vmatprep.subr.bf16.mxu0 0
    %1778 = vmatpush1.bf16.msra.mxu0 0
    %1779 = vmatprep.subr.bf16.mxu0 0
    %1780 = vmatpush1.bf16.msra.mxu0 0
    %1781 = vmatprep.subr.bf16.mxu0 0
    %1782 = vmatpush1.bf16.msra.mxu0 0
    %1783 = vmatprep.subr.bf16.mxu0 0
    %1784 = vmatpush1.bf16.msra.mxu0 0
    %1785 = vmatprep.mubr.bf16.mxu0 0
    %1786 = vmatmul.mubr.bf16.gmra.mrb[0].mxu0 %v1748
    %v1787 = vpop.f32.mrb[0].mxu0
    %v1788 = vadd.f32 0.0, %v1787
    %v1789 = vpop.f32.mrb[0].mxu0
    %v1790 = vpop.f32.mrb[0].mxu0
    %v1791 = vpop.f32.mrb[0].mxu0
    %1792 = vdwg.mxu0
    %v1794 = vsel %vm1119, %v1604, 0
    %v1797 = vsel %vm1611, %v1115, 0
    %1799 = vmatprep.subr.bf16.mxu0 0
    %1800 = vmatpush1.bf16.msra.mxu0 %v1797
    %1801 = vmatprep.subr.bf16.mxu0 0
    %1802 = vmatpush1.bf16.msra.mxu0 0
    %1803 = vmatprep.subr.bf16.mxu0 0
    %1804 = vmatpush1.bf16.msra.mxu0 0
    %1805 = vmatprep.subr.bf16.mxu0 0
    %1806 = vmatpush1.bf16.msra.mxu0 0
    %1807 = vmatprep.subr.bf16.mxu0 0
    %1808 = vmatpush1.bf16.msra.mxu0 0
    %1809 = vmatprep.subr.bf16.mxu0 0
    %1810 = vmatpush1.bf16.msra.mxu0 0
    %1811 = vmatprep.subr.bf16.mxu0 0
    %1812 = vmatpush1.bf16.msra.mxu0 0
    %1813 = vmatprep.subr.bf16.mxu0 0
    %1814 = vmatpush1.bf16.msra.mxu0 0
    %1815 = vmatprep.subr.bf16.mxu0 0
    %1816 = vmatpush1.bf16.msra.mxu0 0
    %1817 = vmatprep.subr.bf16.mxu0 0
    %1818 = vmatpush1.bf16.msra.mxu0 0
    %1819 = vmatprep.subr.bf16.mxu0 0
    %1820 = vmatpush1.bf16.msra.mxu0 0
    %1821 = vmatprep.subr.bf16.mxu0 0
    %1822 = vmatpush1.bf16.msra.mxu0 0
    %1823 = vmatprep.subr.bf16.mxu0 0
    %1824 = vmatpush1.bf16.msra.mxu0 0
    %1825 = vmatprep.subr.bf16.mxu0 0
    %1826 = vmatpush1.bf16.msra.mxu0 0
    %1827 = vmatprep.subr.bf16.mxu0 0
    %1828 = vmatpush1.bf16.msra.mxu0 0
    %1829 = vmatprep.subr.bf16.mxu0 0
    %1830 = vmatpush1.bf16.msra.mxu0 0
    %1831 = vmatprep.mubr.bf16.mxu0 0
    %1832 = vmatmul.mubr.bf16.gmra.mrb[0].mxu0 %v1794
    %v1833 = vpop.f32.mrb[0].mxu0
    %v1834 = vadd.f32 0.0, %v1833
    %v1835 = vpop.f32.mrb[0].mxu0
    %v1836 = vpop.f32.mrb[0].mxu0
    %v1837 = vpop.f32.mrb[0].mxu0
    %1838 = vdwg.mxu0
    %v1840 = vsel %vm1119, %v1605, 0
    %v1843 = vsel %vm1611, %v1116, 0
    %1845 = vmatprep.subr.bf16.mxu0 0
    %1846 = vmatpush1.bf16.msra.mxu0 %v1843
    %1847 = vmatprep.subr.bf16.mxu0 0
    %1848 = vmatpush1.bf16.msra.mxu0 0
    %1849 = vmatprep.subr.bf16.mxu0 0
    %1850 = vmatpush1.bf16.msra.mxu0 0
    %1851 = vmatprep.subr.bf16.mxu0 0
    %1852 = vmatpush1.bf16.msra.mxu0 0
    %1853 = vmatprep.subr.bf16.mxu0 0
    %1854 = vmatpush1.bf16.msra.mxu0 0
    %1855 = vmatprep.subr.bf16.mxu0 0
    %1856 = vmatpush1.bf16.msra.mxu0 0
    %1857 = vmatprep.subr.bf16.mxu0 0
    %1858 = vmatpush1.bf16.msra.mxu0 0
    %1859 = vmatprep.subr.bf16.mxu0 0
    %1860 = vmatpush1.bf16.msra.mxu0 0
    %1861 = vmatprep.subr.bf16.mxu0 0
    %1862 = vmatpush1.bf16.msra.mxu0 0
    %1863 = vmatprep.subr.bf16.mxu0 0
    %1864 = vmatpush1.bf16.msra.mxu0 0
    %1865 = vmatprep.subr.bf16.mxu0 0
    %1866 = vmatpush1.bf16.msra.mxu0 0
    %1867 = vmatprep.subr.bf16.mxu0 0
    %1868 = vmatpush1.bf16.msra.mxu0 0
    %1869 = vmatprep.subr.bf16.mxu0 0
    %1870 = vmatpush1.bf16.msra.mxu0 0
    %1871 = vmatprep.subr.bf16.mxu0 0
    %1872 = vmatpush1.bf16.msra.mxu0 0
    %1873 = vmatprep.subr.bf16.mxu0 0
    %1874 = vmatpush1.bf16.msra.mxu0 0
    %1875 = vmatprep.subr.bf16.mxu0 0
    %1876 = vmatpush1.bf16.msra.mxu0 0
    %1877 = vmatprep.mubr.bf16.mxu0 0
    %1878 = vmatmul.mubr.bf16.gmra.mrb[0].mxu0 %v1840
    %v1879 = vpop.f32.mrb[0].mxu0
    %v1880 = vadd.f32 0.0, %v1879
    %v1881 = vpop.f32.mrb[0].mxu0
    %v1882 = vpop.f32.mrb[0].mxu0
    %v1883 = vpop.f32.mrb[0].mxu0
    %1884 = vdwg.mxu0
    %v1886 = vsel %vm1119, %v1606, 0
    %v1889 = vsel %vm1611, %v1117, 0
    %1891 = vmatprep.subr.bf16.mxu0 0
    %1892 = vmatpush1.bf16.msra.mxu0 %v1889
    %1893 = vmatprep.subr.bf16.mxu0 0
    %1894 = vmatpush1.bf16.msra.mxu0 0
    %1895 = vmatprep.subr.bf16.mxu0 0
    %1896 = vmatpush1.bf16.msra.mxu0 0
    %1897 = vmatprep.subr.bf16.mxu0 0
    %1898 = vmatpush1.bf16.msra.mxu0 0
    %1899 = vmatprep.subr.bf16.mxu0 0
    %1900 = vmatpush1.bf16.msra.mxu0 0
    %1901 = vmatprep.subr.bf16.mxu0 0
    %1902 = vmatpush1.bf16.msra.mxu0 0
    %1903 = vmatprep.subr.bf16.mxu0 0
    %1904 = vmatpush1.bf16.msra.mxu0 0
    %1905 = vmatprep.subr.bf16.mxu0 0
    %1906 = vmatpush1.bf16.msra.mxu0 0
    %1907 = vmatprep.subr.bf16.mxu0 0
    %1908 = vmatpush1.bf16.msra.mxu0 0
    %1909 = vmatprep.subr.bf16.mxu0 0
    %1910 = vmatpush1.bf16.msra.mxu0 0
    %1911 = vmatprep.subr.bf16.mxu0 0
    %1912 = vmatpush1.bf16.msra.mxu0 0
    %1913 = vmatprep.subr.bf16.mxu0 0
    %1914 = vmatpush1.bf16.msra.mxu0 0
    %1915 = vmatprep.subr.bf16.mxu0 0
    %1916 = vmatpush1.bf16.msra.mxu0 0
    %1917 = vmatprep.subr.bf16.mxu0 0
    %1918 = vmatpush1.bf16.msra.mxu0 0
    %1919 = vmatprep.subr.bf16.mxu0 0
    %1920 = vmatpush1.bf16.msra.mxu0 0
    %1921 = vmatprep.subr.bf16.mxu0 0
    %1922 = vmatpush1.bf16.msra.mxu0 0
    %1923 = vmatprep.mubr.bf16.mxu0 0
    %1924 = vmatmul.mubr.bf16.gmra.mrb[0].mxu0 %v1886
    %v1925 = vpop.f32.mrb[0].mxu0
    %v1926 = vadd.f32 0.0, %v1925
    %v1927 = vpop.f32.mrb[0].mxu0
    %v1928 = vpop.f32.mrb[0].mxu0
    %v1929 = vpop.f32.mrb[0].mxu0
    %1930 = vdwg.mxu0
    %v1932 = vsel %vm1119, %v1607, 0
    %v1935 = vsel %vm1611, %v1118, 0
    %1937 = vmatprep.subr.bf16.mxu0 0
    %1938 = vmatpush1.bf16.msra.mxu0 %v1935
    %1939 = vmatprep.subr.bf16.mxu0 0
    %1940 = vmatpush1.bf16.msra.mxu0 0
    %1941 = vmatprep.subr.bf16.mxu0 0
    %1942 = vmatpush1.bf16.msra.mxu0 0
    %1943 = vmatprep.subr.bf16.mxu0 0
    %1944 = vmatpush1.bf16.msra.mxu0 0
    %1945 = vmatprep.subr.bf16.mxu0 0
    %1946 = vmatpush1.bf16.msra.mxu0 0
    %1947 = vmatprep.subr.bf16.mxu0 0
    %1948 = vmatpush1.bf16.msra.mxu0 0
    %1949 = vmatprep.subr.bf16.mxu0 0
    %1950 = vmatpush1.bf16.msra.mxu0 0
    %1951 = vmatprep.subr.bf16.mxu0 0
    %1952 = vmatpush1.bf16.msra.mxu0 0
    %1953 = vmatprep.subr.bf16.mxu0 0
    %1954 = vmatpush1.bf16.msra.mxu0 0
    %1955 = vmatprep.subr.bf16.mxu0 0
    %1956 = vmatpush1.bf16.msra.mxu0 0
    %1957 = vmatprep.subr.bf16.mxu0 0
    %1958 = vmatpush1.bf16.msra.mxu0 0
    %1959 = vmatprep.subr.bf16.mxu0 0
    %1960 = vmatpush1.bf16.msra.mxu0 0
    %1961 = vmatprep.subr.bf16.mxu0 0
    %1962 = vmatpush1.bf16.msra.mxu0 0
    %1963 = vmatprep.subr.bf16.mxu0 0
    %1964 = vmatpush1.bf16.msra.mxu0 0
    %1965 = vmatprep.subr.bf16.mxu0 0
    %1966 = vmatpush1.bf16.msra.mxu0 0
    %1967 = vmatprep.subr.bf16.mxu0 0
    %1968 = vmatpush1.bf16.msra.mxu0 0
    %1969 = vmatprep.mubr.bf16.mxu0 0
    %1970 = vmatmul.mubr.bf16.gmra.mrb[0].mxu0 %v1932
    %v1971 = vpop.f32.mrb[0].mxu0
    %v1972 = vadd.f32 0.0, %v1971
    %v1973 = vpop.f32.mrb[0].mxu0
    %v1974 = vpop.f32.mrb[0].mxu0
    %v1975 = vpop.f32.mrb[0].mxu0
    %1976 = vdwg.mxu0
    %v1977 = vadd.f32 %v1560, %v1650
    %v1978 = vadd.f32 %v1561, %v1696
    %v1979 = vadd.f32 %v1562, %v1742
    %v1980 = vadd.f32 %v1563, %v1788
    %v1981 = vadd.f32 %v1564, %v1834
    %v1982 = vadd.f32 %v1565, %v1880
    %v1983 = vadd.f32 %v1566, %v1926
    %v1984 = vadd.f32 %v1567, %v1972
    %v1985 = vrcp.pop %v1592
    %v1986 = vrcp.pop %v1593
    %v1987 = vrcp.pop %v1594
    %v1988 = vrcp.pop %v1595
    %v1989 = vrcp.pop %v1596
    %v1990 = vrcp.pop %v1597
    %v1991 = vrcp.pop %v1598
    %v1992 = vrcp.pop %v1599
    %v1993 = vmul.f32 %v1977, %v1985
    %v1994 = vmul.f32 %v1978, %v1986
    %v1995 = vmul.f32 %v1979, %v1987
    %v1996 = vmul.f32 %v1980, %v1988
    %v1997 = vmul.f32 %v1981, %v1989
    %v1998 = vmul.f32 %v1982, %v1990
    %v1999 = vmul.f32 %v1983, %v1991
    %v2000 = vmul.f32 %v1984, %v1992
    %v2001 = vcombine.low %v1993, %v1995
    %v2002 = vcombine.high %v1993, %v1995
    %v2004 = vunpack.c.l.s4 1983009808
    %v2005 = vunpack.c.0.s8 %v2004
    %v2006 = vlaneseq
    %v2007 = vshrl.u32 %v2006, 7
    %v2008 = vsub.s32 %v2005, %v2007
    %v2009 = vrot.slane %v2001, %v2008
    %v2011 = vunpack.c.l.s4 1983009808
    %v2012 = vunpack.c.0.s8 %v2011
    %v2013 = vlaneseq
    %v2014 = vshrl.u32 %v2013, 7
    %v2015 = vsub.s32 %v2012, %v2014
    %v2016 = vrot.slane %v2002, %v2015
    %v2017 = vcombine.low %v1994, %v1996
    %v2018 = vcombine.high %v1994, %v1996
    %v2020 = vunpack.c.l.s4 1983009808
    %v2021 = vunpack.c.0.s8 %v2020
    %v2022 = vlaneseq
    %v2023 = vshrl.u32 %v2022, 7
    %v2024 = vsub.s32 %v2021, %v2023
    %v2025 = vrot.slane %v2017, %v2024
    %v2027 = vunpack.c.l.s4 1983009808
    %v2028 = vunpack.c.0.s8 %v2027
    %v2029 = vlaneseq
    %v2030 = vshrl.u32 %v2029, 7
    %v2031 = vsub.s32 %v2028, %v2030
    %v2032 = vrot.slane %v2018, %v2031
    %v2033 = vcombine.low %v2009, %v2025
    %v2034 = vcombine.high %v2009, %v2025
    %v2036 = vunpack.c.l.s4 1934713408
    %v2037 = vunpack.c.0.s8 %v2036
    %v2038 = vlaneseq
    %v2039 = vshrl.u32 %v2038, 7
    %v2040 = vsub.s32 %v2037, %v2039
    %v2041 = vrot.slane %v2033, %v2040
    %v2043 = vunpack.c.l.s4 1934713408
    %v2044 = vunpack.c.0.s8 %v2043
    %v2045 = vlaneseq
    %v2046 = vshrl.u32 %v2045, 7
    %v2047 = vsub.s32 %v2044, %v2046
    %v2048 = vrot.slane %v2034, %v2047
    %v2049 = vcombine.low %v2016, %v2032
    %v2050 = vcombine.high %v2016, %v2032
    %v2052 = vunpack.c.l.s4 1934713408
    %v2053 = vunpack.c.0.s8 %v2052
    %v2054 = vlaneseq
    %v2055 = vshrl.u32 %v2054, 7
    %v2056 = vsub.s32 %v2053, %v2055
    %v2057 = vrot.slane %v2049, %v2056
    %v2059 = vunpack.c.l.s4 1934713408
    %v2060 = vunpack.c.0.s8 %v2059
    %v2061 = vlaneseq
    %v2062 = vshrl.u32 %v2061, 7
    %v2063 = vsub.s32 %v2060, %v2062
    %v2064 = vrot.slane %v2050, %v2063
    %v2065 = vcombine.high %v2041, 0.0
    %v2066 = vcombine.high %v2048, 0.0
    %v2067 = vcombine.high %v2057, 0.0
    %v2068 = vcombine.high %v2064, 0.0
    %v2069 = vcombine.low %v1997, %v1999
    %v2070 = vcombine.high %v1997, %v1999
    %v2072 = vunpack.c.l.s4 1983009808
    %v2073 = vunpack.c.0.s8 %v2072
    %v2074 = vlaneseq
    %v2075 = vshrl.u32 %v2074, 7
    %v2076 = vsub.s32 %v2073, %v2075
    %v2077 = vrot.slane %v2069, %v2076
    %v2079 = vunpack.c.l.s4 1983009808
    %v2080 = vunpack.c.0.s8 %v2079
    %v2081 = vlaneseq
    %v2082 = vshrl.u32 %v2081, 7
    %v2083 = vsub.s32 %v2080, %v2082
    %v2084 = vrot.slane %v2070, %v2083
    %v2085 = vcombine.low %v1998, %v2000
    %v2086 = vcombine.high %v1998, %v2000
    %v2088 = vunpack.c.l.s4 1983009808
    %v2089 = vunpack.c.0.s8 %v2088
    %v2090 = vlaneseq
    %v2091 = vshrl.u32 %v2090, 7
    %v2092 = vsub.s32 %v2089, %v2091
    %v2093 = vrot.slane %v2085, %v2092
    %v2095 = vunpack.c.l.s4 1983009808
    %v2096 = vunpack.c.0.s8 %v2095
    %v2097 = vlaneseq
    %v2098 = vshrl.u32 %v2097, 7
    %v2099 = vsub.s32 %v2096, %v2098
    %v2100 = vrot.slane %v2086, %v2099
    %v2101 = vcombine.low %v2077, %v2093
    %v2102 = vcombine.high %v2077, %v2093
    %v2104 = vunpack.c.l.s4 1934713408
    %v2105 = vunpack.c.0.s8 %v2104
    %v2106 = vlaneseq
    %v2107 = vshrl.u32 %v2106, 7
    %v2108 = vsub.s32 %v2105, %v2107
    %v2109 = vrot.slane %v2101, %v2108
    %v2111 = vunpack.c.l.s4 1934713408
    %v2112 = vunpack.c.0.s8 %v2111
    %v2113 = vlaneseq
    %v2114 = vshrl.u32 %v2113, 7
    %v2115 = vsub.s32 %v2112, %v2114
    %v2116 = vrot.slane %v2102, %v2115
    %v2117 = vcombine.low %v2084, %v2100
    %v2118 = vcombine.high %v2084, %v2100
    %v2120 = vunpack.c.l.s4 1934713408
    %v2121 = vunpack.c.0.s8 %v2120
    %v2122 = vlaneseq
    %v2123 = vshrl.u32 %v2122, 7
    %v2124 = vsub.s32 %v2121, %v2123
    %v2125 = vrot.slane %v2117, %v2124
    %v2127 = vunpack.c.l.s4 1934713408
    %v2128 = vunpack.c.0.s8 %v2127
    %v2129 = vlaneseq
    %v2130 = vshrl.u32 %v2129, 7
    %v2131 = vsub.s32 %v2128, %v2130
    %v2132 = vrot.slane %v2118, %v2131
    %v2133 = vcombine.high %v2109, 0.0
    %v2134 = vcombine.high %v2116, 0.0
    %v2135 = vcombine.high %v2125, 0.0
    %v2136 = vcombine.high %v2132, 0.0
    %v2137 = vcombine.low %v2041, %v2048
    %v2139 = vunpack.c.l.s4 1983009808
    %v2140 = vunpack.c.0.s8 %v2139
    %v2141 = vlaneseq
    %v2142 = vshrl.u32 %v2141, 7
    %v2143 = vsub.s32 %v2140, %v2142
    %v2144 = vrot.slane %v2137, %v2143
    %v2145 = vcombine.low %v2065, %v2066
    %v2147 = vunpack.c.l.s4 1983009808
    %v2148 = vunpack.c.0.s8 %v2147
    %v2149 = vlaneseq
    %v2150 = vshrl.u32 %v2149, 7
    %v2151 = vsub.s32 %v2148, %v2150
    %v2152 = vrot.slane %v2145, %v2151
    %v2153 = vcombine.low %v2057, %v2064
    %v2155 = vunpack.c.l.s4 1983009808
    %v2156 = vunpack.c.0.s8 %v2155
    %v2157 = vlaneseq
    %v2158 = vshrl.u32 %v2157, 7
    %v2159 = vsub.s32 %v2156, %v2158
    %v2160 = vrot.slane %v2153, %v2159
    %v2161 = vcombine.low %v2067, %v2068
    %v2163 = vunpack.c.l.s4 1983009808
    %v2164 = vunpack.c.0.s8 %v2163
    %v2165 = vlaneseq
    %v2166 = vshrl.u32 %v2165, 7
    %v2167 = vsub.s32 %v2164, %v2166
    %v2168 = vrot.slane %v2161, %v2167
    %v2169 = vcombine.low %v2144, %v2152
    %v2170 = vcombine.high %v2144, %v2152
    %v2172 = vunpack.c.l.s4 1934713408
    %v2173 = vunpack.c.0.s8 %v2172
    %v2174 = vlaneseq
    %v2175 = vshrl.u32 %v2174, 7
    %v2176 = vsub.s32 %v2173, %v2175
    %v2177 = vrot.slane %v2169, %v2176
    %v2179 = vunpack.c.l.s4 1934713408
    %v2180 = vunpack.c.0.s8 %v2179
    %v2181 = vlaneseq
    %v2182 = vshrl.u32 %v2181, 7
    %v2183 = vsub.s32 %v2180, %v2182
    %v2184 = vrot.slane %v2170, %v2183
    %v2185 = vcombine.low %v2160, %v2168
    %v2186 = vcombine.high %v2160, %v2168
    %v2188 = vunpack.c.l.s4 1934713408
    %v2189 = vunpack.c.0.s8 %v2188
    %v2190 = vlaneseq
    %v2191 = vshrl.u32 %v2190, 7
    %v2192 = vsub.s32 %v2189, %v2191
    %v2193 = vrot.slane %v2185, %v2192
    %v2195 = vunpack.c.l.s4 1934713408
    %v2196 = vunpack.c.0.s8 %v2195
    %v2197 = vlaneseq
    %v2198 = vshrl.u32 %v2197, 7
    %v2199 = vsub.s32 %v2196, %v2198
    %v2200 = vrot.slane %v2186, %v2199
    %v2201 = vcombine.low %v2177, %v2193
    %v2202 = vcombine.high %v2177, %v2193
    %v2203 = vcombine.low %v2184, %v2200
    %v2204 = vcombine.high %v2184, %v2200
    %v2205 = vcombine.low %v2109, %v2116
    %v2207 = vunpack.c.l.s4 1983009808
    %v2208 = vunpack.c.0.s8 %v2207
    %v2209 = vlaneseq
    %v2210 = vshrl.u32 %v2209, 7
    %v2211 = vsub.s32 %v2208, %v2210
    %v2212 = vrot.slane %v2205, %v2211
    %v2213 = vcombine.low %v2133, %v2134
    %v2215 = vunpack.c.l.s4 1983009808
    %v2216 = vunpack.c.0.s8 %v2215
    %v2217 = vlaneseq
    %v2218 = vshrl.u32 %v2217, 7
    %v2219 = vsub.s32 %v2216, %v2218
    %v2220 = vrot.slane %v2213, %v2219
    %v2221 = vcombine.low %v2125, %v2132
    %v2223 = vunpack.c.l.s4 1983009808
    %v2224 = vunpack.c.0.s8 %v2223
    %v2225 = vlaneseq
    %v2226 = vshrl.u32 %v2225, 7
    %v2227 = vsub.s32 %v2224, %v2226
    %v2228 = vrot.slane %v2221, %v2227
    %v2229 = vcombine.low %v2135, %v2136
    %v2231 = vunpack.c.l.s4 1983009808
    %v2232 = vunpack.c.0.s8 %v2231
    %v2233 = vlaneseq
    %v2234 = vshrl.u32 %v2233, 7
    %v2235 = vsub.s32 %v2232, %v2234
    %v2236 = vrot.slane %v2229, %v2235
    %v2237 = vcombine.low %v2212, %v2220
    %v2238 = vcombine.high %v2212, %v2220
    %v2240 = vunpack.c.l.s4 1934713408
    %v2241 = vunpack.c.0.s8 %v2240
    %v2242 = vlaneseq
    %v2243 = vshrl.u32 %v2242, 7
    %v2244 = vsub.s32 %v2241, %v2243
    %v2245 = vrot.slane %v2237, %v2244
    %v2247 = vunpack.c.l.s4 1934713408
    %v2248 = vunpack.c.0.s8 %v2247
    %v2249 = vlaneseq
    %v2250 = vshrl.u32 %v2249, 7
    %v2251 = vsub.s32 %v2248, %v2250
    %v2252 = vrot.slane %v2238, %v2251
    %v2253 = vcombine.low %v2228, %v2236
    %v2254 = vcombine.high %v2228, %v2236
    %v2256 = vunpack.c.l.s4 1934713408
    %v2257 = vunpack.c.0.s8 %v2256
    %v2258 = vlaneseq
    %v2259 = vshrl.u32 %v2258, 7
    %v2260 = vsub.s32 %v2257, %v2259
    %v2261 = vrot.slane %v2253, %v2260
    %v2263 = vunpack.c.l.s4 1934713408
    %v2264 = vunpack.c.0.s8 %v2263
    %v2265 = vlaneseq
    %v2266 = vshrl.u32 %v2265, 7
    %v2267 = vsub.s32 %v2264, %v2266
    %v2268 = vrot.slane %v2254, %v2267
    %v2269 = vcombine.low %v2245, %v2261
    %v2270 = vcombine.high %v2245, %v2261
    %v2271 = vcombine.low %v2252, %v2268
    %v2272 = vcombine.high %v2252, %v2268
    %2275 = vrot.lane.b32.xlu0 %v2202, 8
    %v2276 = vpop.permute.xlu0 %2275
    %2277 = vrot.lane.b32.xlu0 %v2270, 8
    %v2278 = vpop.permute.xlu0 %2277
    %2283 = vrot.lane.b32.xlu0 %v2203, 16
    %v2284 = vpop.permute.xlu0 %2283
    %2285 = vrot.lane.b32.xlu0 %v2271, 16
    %v2286 = vpop.permute.xlu0 %2285
    %2291 = vrot.lane.b32.xlu0 %v2204, 24
    %v2292 = vpop.permute.xlu0 %2291
    %2293 = vrot.lane.b32.xlu0 %v2272, 24
    %v2294 = vpop.permute.xlu0 %2293
    %v2297 = vsel %vm1119, %v2201, %v2276
    %v2298 = vsel %vm1119, %v2269, %v2278
    %vm2299 = vcmask 130048
    %v2300 = vsel %vm2299, %v2297, %v2284
    %v2301 = vsel %vm2299, %v2298, %v2286
    %vm2302 = vcmask 195584
    %v2303 = vsel %vm2302, %v2300, %v2292
    %v2304 = vsel %vm2302, %v2301, %v2294
    %v2305 = vpack.c.bf16 %v2304, %v2303
    %v2306 = vld [vmem:[%s5] sm:$0xf]
    %v2307 = vld [vmem:[%s5 + $0x4] sm:$0xf]
    %v2308 = vld [vmem:[%s5 + $0x8] sm:$0xf]
    %v2309 = vld [vmem:[%s5 + $0xc] sm:$0xf]
    %v2310 = vld [vmem:[%s6] sm:$0x1]
    %v2312 = vlaneseq
    %v2313 = vshrl.u32 %v2312, 7
    %v2314 = vsub.s32 0, %v2313
    %v2315 = vrot.slane %v2310, %v2314
    %v2321 = vunpack.c.l.b16 %v2306
    %v2322 = vunpack.c.l.b16 %v2307
    %v2323 = vunpack.c.l.b16 %v2308
    %v2324 = vunpack.c.l.b16 %v2309
    %v2325 = vpack.c.b16 %v2322, %v2321
    %v2326 = vpack.c.b16 %v2324, %v2323
    %v2330 = vsel %vm50, %v2305, 0
    %2332 = vmatprep.subr.bf16.mxu0 0
    %2333 = vmatpush1.bf16.msra.mxu0 %v2325
    %2334 = vmatprep.subr.bf16.mxu0 0
    %2335 = vmatpush1.bf16.msra.mxu0 %v2326
    %2336 = vmatprep.subr.bf16.mxu0 0
    %2337 = vmatpush1.bf16.msra.mxu0 0
    %2338 = vmatprep.subr.bf16.mxu0 0
    %2339 = vmatpush1.bf16.msra.mxu0 0
    %2340 = vmatprep.subr.bf16.mxu0 0
    %2341 = vmatpush1.bf16.msra.mxu0 0
    %2342 = vmatprep.subr.bf16.mxu0 0
    %2343 = vmatpush1.bf16.msra.mxu0 0
    %2344 = vmatprep.subr.bf16.mxu0 0
    %2345 = vmatpush1.bf16.msra.mxu0 0
    %2346 = vmatprep.subr.bf16.mxu0 0
    %2347 = vmatpush1.bf16.msra.mxu0 0
    %2348 = vmatprep.subr.bf16.mxu0 0
    %2349 = vmatpush1.bf16.msra.mxu0 0
    %2350 = vmatprep.subr.bf16.mxu0 0
    %2351 = vmatpush1.bf16.msra.mxu0 0
    %2352 = vmatprep.subr.bf16.mxu0 0
    %2353 = vmatpush1.bf16.msra.mxu0 0
    %2354 = vmatprep.subr.bf16.mxu0 0
    %2355 = vmatpush1.bf16.msra.mxu0 0
    %2356 = vmatprep.subr.bf16.mxu0 0
    %2357 = vmatpush1.bf16.msra.mxu0 0
    %2358 = vmatprep.subr.bf16.mxu0 0
    %2359 = vmatpush1.bf16.msra.mxu0 0
    %2360 = vmatprep.subr.bf16.mxu0 0
    %2361 = vmatpush1.bf16.msra.mxu0 0
    %2362 = vmatprep.subr.bf16.mxu0 0
    %2363 = vmatpush1.bf16.msra.mxu0 0
    %2364 = vmatprep.mubr.bf16.mxu0 0
    %2365 = vmatmul.mubr.bf16.gmra.mrb[0].mxu0 %v2330
    %v2366 = vpop.f32.mrb[0].mxu0
    %v2367 = vadd.f32 %v2315, %v2366
    %v2368 = vpop.f32.mrb[0].mxu0
    %v2369 = vpop.f32.mrb[0].mxu0
    %v2370 = vadd.f32 %v2315, %v2369
    %v2371 = vpop.f32.mrb[0].mxu0
    %2372 = vdwg.mxu0
    %v2373 = vadd.f32 %v46, %v2367
    %v2374 = vadd.f32 %v47, %v2370
    %2375 = vst.msk [vmem:[#allocation4] sm:$0xff] %vm50, %v2373
    %2376 = vst.msk [vmem:[#allocation4 + $0x8] sm:$0xff] %vm50, %v2374
    %v2377 = vld [vmem:[#allocation4] sm:$0xff]
    %v2378 = vld [vmem:[#allocation4 + $0x8] sm:$0xff]
    %v2379 = vld [vmem:[%s7] sm:$0x1]
    %v2380 = vld [vmem:[%s8] sm:$0x1]
    %v2381 = vsel %vm50, %v2377, 0.0
    %2382 = vadd.xlane.f32.xlu0 %v2381
    %v2383 = vpop.xlane.xlu0 %2382
    %v2384 = vsel %vm50, %v2378, 0.0
    %2385 = vadd.xlane.f32.xlu0 %v2384
    %v2386 = vpop.xlane.xlu0 %2385
    %v2387 = vmul.f32 %v2383, %v57
    %v2388 = vmul.f32 %v2386, %v57
    %v2389 = vsub.f32 %v2377, %v2387
    %v2390 = vsub.f32 %v2378, %v2388
    %v2391 = vmul.f32 %v2389, %v2389
    %v2392 = vmul.f32 %v2390, %v2390
    %v2393 = vsel %vm50, %v2391, 0.0
    %2394 = vadd.xlane.f32.xlu0 %v2393
    %v2395 = vpop.xlane.xlu0 %2394
    %v2396 = vsel %vm50, %v2392, 0.0
    %2397 = vadd.xlane.f32.xlu0 %v2396
    %v2398 = vpop.xlane.xlu0 %2397
    %v2399 = vmul.f32 %v2395, %v57
    %v2400 = vmul.f32 %v2398, %v57
    %v2401 = vadd.f32 %v2399, 1e-05
    %v2402 = vadd.f32 %v2400, 1e-05
    %v2403 = vrsqrt.pop %v2401
    %v2404 = vrsqrt.pop %v2402
    %v2405 = vmul.f32 %v2389, %v2403
    %v2406 = vmul.f32 %v2390, %v2404
    %v2408 = vlaneseq
    %v2409 = vshrl.u32 %v2408, 7
    %v2410 = vsub.s32 0, %v2409
    %v2411 = vrot.slane %v2379, %v2410
    %v2413 = vmul.f32 %v2405, %v2411
    %v2414 = vmul.f32 %v2406, %v2411
    %v2416 = vlaneseq
    %v2417 = vshrl.u32 %v2416, 7
    %v2418 = vsub.s32 0, %v2417
    %v2419 = vrot.slane %v2380, %v2418
    %v2421 = vadd.f32 %v2413, %v2419
    %v2422 = vadd.f32 %v2414, %v2419
    %v2423 = vpack.c.bf16 %v2422, %v2421
    %v2424 = vld [vmem:[%s9] sm:$0xf]
    %v2425 = vld [vmem:[%s9 + $0x4] sm:$0xf]
    %v2426 = vld [vmem:[%s9 + $0x8] sm:$0xf]
    %v2427 = vld [vmem:[%s9 + $0xc] sm:$0xf]
    %v2428 = vld [vmem:[%s10] sm:$0x1]
    %v2430 = vlaneseq
    %v2431 = vshrl.u32 %v2430, 7
    %v2432 = vsub.s32 0, %v2431
    %v2433 = vrot.slane %v2428, %v2432
    %v2439 = vunpack.c.l.b16 %v2424
    %v2440 = vunpack.c.l.b16 %v2425
    %v2441 = vunpack.c.l.b16 %v2426
    %v2442 = vunpack.c.l.b16 %v2427
    %v2443 = vpack.c.b16 %v2440, %v2439
    %v2444 = vpack.c.b16 %v2442, %v2441
    %v2448 = vsel %vm50, %v2423, 0
    %2450 = vmatprep.subr.bf16.mxu0 0
    %2451 = vmatpush1.bf16.msra.mxu0 %v2443
    %2452 = vmatprep.subr.bf16.mxu0 0
    %2453 = vmatpush1.bf16.msra.mxu0 %v2444
    %2454 = vmatprep.subr.bf16.mxu0 0
    %2455 = vmatpush1.bf16.msra.mxu0 0
    %2456 = vmatprep.subr.bf16.mxu0 0
    %2457 = vmatpush1.bf16.msra.mxu0 0
    %2458 = vmatprep.subr.bf16.mxu0 0
    %2459 = vmatpush1.bf16.msra.mxu0 0
    %2460 = vmatprep.subr.bf16.mxu0 0
    %2461 = vmatpush1.bf16.msra.mxu0 0
    %2462 = vmatprep.subr.bf16.mxu0 0
    %2463 = vmatpush1.bf16.msra.mxu0 0
    %2464 = vmatprep.subr.bf16.mxu0 0
    %2465 = vmatpush1.bf16.msra.mxu0 0
    %2466 = vmatprep.subr.bf16.mxu0 0
    %2467 = vmatpush1.bf16.msra.mxu0 0
    %2468 = vmatprep.subr.bf16.mxu0 0
    %2469 = vmatpush1.bf16.msra.mxu0 0
    %2470 = vmatprep.subr.bf16.mxu0 0
    %2471 = vmatpush1.bf16.msra.mxu0 0
    %2472 = vmatprep.subr.bf16.mxu0 0
    %2473 = vmatpush1.bf16.msra.mxu0 0
    %2474 = vmatprep.subr.bf16.mxu0 0
    %2475 = vmatpush1.bf16.msra.mxu0 0
    %2476 = vmatprep.subr.bf16.mxu0 0
    %2477 = vmatpush1.bf16.msra.mxu0 0
    %2478 = vmatprep.subr.bf16.mxu0 0
    %2479 = vmatpush1.bf16.msra.mxu0 0
    %2480 = vmatprep.subr.bf16.mxu0 0
    %2481 = vmatpush1.bf16.msra.mxu0 0
    %2482 = vmatprep.mubr.bf16.mxu0 0
    %2483 = vmatmul.mubr.bf16.gmra.mrb[0].mxu0 %v2448
    %v2484 = vpop.f32.mrb[0].mxu0
    %v2485 = vadd.f32 %v2433, %v2484
    %v2486 = vpop.f32.mrb[0].mxu0
    %v2487 = vpop.f32.mrb[0].mxu0
    %v2488 = vadd.f32 %v2433, %v2487
    %v2489 = vpop.f32.mrb[0].mxu0
    %2490 = vdwg.mxu0
    %v2491 = vmul.f32 %v2485, 1.702
    %v2492 = vmul.f32 %v2488, 1.702
    %v2493 = vxor.u32 %v2491, 2147483648
    %v2494 = vxor.u32 %v2492, 2147483648
    %v2495 = vmul.f32 %v2493, 1.442695
    %v2496 = vpow.pop %v2495
    %v2497 = vmul.f32 %v2494, 1.442695
    %v2498 = vpow.pop %v2497
    %v2499 = vadd.f32 %v2496, 1.0
    %v2500 = vadd.f32 %v2498, 1.0
    %v2501 = vrcp.pop %v2499
    %v2502 = vmul.f32 1.0, %v2501
    %v2503 = vrcp.pop %v2500
    %v2504 = vmul.f32 1.0, %v2503
    %v2505 = vmul.f32 %v2485, %v2502
    %v2506 = vmul.f32 %v2488, %v2504
    %v2507 = vpack.c.bf16 %v2506, %v2505
    %v2508 = vld [vmem:[%s11] sm:$0xf]
    %v2509 = vld [vmem:[%s11 + $0x4] sm:$0xf]
    %v2510 = vld [vmem:[%s11 + $0x8] sm:$0xf]
    %v2511 = vld [vmem:[%s11 + $0xc] sm:$0xf]
    %v2512 = vld [vmem:[%s11 + $0x10] sm:$0xf]
    %v2513 = vld [vmem:[%s11 + $0x14] sm:$0xf]
    %v2514 = vld [vmem:[%s11 + $0x18] sm:$0xf]
    %v2515 = vld [vmem:[%s11 + $0x1c] sm:$0xf]
    %v2516 = vld [vmem:[%s11 + $0x20] sm:$0xf]
    %v2517 = vld [vmem:[%s11 + $0x24] sm:$0xf]
    %v2518 = vld [vmem:[%s11 + $0x28] sm:$0xf]
    %v2519 = vld [vmem:[%s11 + $0x2c] sm:$0xf]
    %v2520 = vld [vmem:[%s11 + $0x30] sm:$0xf]
    %v2521 = vld [vmem:[%s11 + $0x34] sm:$0xf]
    %v2522 = vld [vmem:[%s11 + $0x38] sm:$0xf]
    %v2523 = vld [vmem:[%s11 + $0x3c] sm:$0xf]
    %v2524 = vld [vmem:[%s12] sm:$0x1]
    %v2526 = vlaneseq
    %v2527 = vshrl.u32 %v2526, 7
    %v2528 = vsub.s32 0, %v2527
    %v2529 = vrot.slane %v2524, %v2528
    %v2547 = vunpack.c.l.b16 %v2508
    %v2548 = vunpack.c.l.b16 %v2509
    %v2549 = vunpack.c.l.b16 %v2510
    %v2550 = vunpack.c.l.b16 %v2511
    %v2551 = vunpack.c.l.b16 %v2512
    %v2552 = vunpack.c.l.b16 %v2513
    %v2553 = vunpack.c.l.b16 %v2514
    %v2554 = vunpack.c.l.b16 %v2515
    %v2555 = vunpack.c.l.b16 %v2516
    %v2556 = vunpack.c.l.b16 %v2517
    %v2557 = vunpack.c.l.b16 %v2518
    %v2558 = vunpack.c.l.b16 %v2519
    %v2559 = vunpack.c.l.b16 %v2520
    %v2560 = vunpack.c.l.b16 %v2521
    %v2561 = vunpack.c.l.b16 %v2522
    %v2562 = vunpack.c.l.b16 %v2523
    %v2563 = vpack.c.b16 %v2548, %v2547
    %v2564 = vpack.c.b16 %v2550, %v2549
    %v2565 = vpack.c.b16 %v2552, %v2551
    %v2566 = vpack.c.b16 %v2554, %v2553
    %v2567 = vpack.c.b16 %v2556, %v2555
    %v2568 = vpack.c.b16 %v2558, %v2557
    %v2569 = vpack.c.b16 %v2560, %v2559
    %v2570 = vpack.c.b16 %v2562, %v2561
    %2579 = vmatprep.subr.bf16.mxu0 0
    %2580 = vmatpush1.bf16.msra.mxu0 %v2563
    %2581 = vmatprep.subr.bf16.mxu0 0
    %2582 = vmatpush1.bf16.msra.mxu0 %v2564
    %2583 = vmatprep.subr.bf16.mxu0 0
    %2584 = vmatpush1.bf16.msra.mxu0 %v2565
    %2585 = vmatprep.subr.bf16.mxu0 0
    %2586 = vmatpush1.bf16.msra.mxu0 %v2566
    %2587 = vmatprep.subr.bf16.mxu0 0
    %2588 = vmatpush1.bf16.msra.mxu0 %v2567
    %2589 = vmatprep.subr.bf16.mxu0 0
    %2590 = vmatpush1.bf16.msra.mxu0 %v2568
    %2591 = vmatprep.subr.bf16.mxu0 0
    %2592 = vmatpush1.bf16.msra.mxu0 %v2569
    %2593 = vmatprep.subr.bf16.mxu0 0
    %2594 = vmatpush1.bf16.msra.mxu0 %v2570
    %2595 = vmatprep.subr.bf16.mxu0 0
    %2596 = vmatpush1.bf16.msra.mxu0 0
    %2597 = vmatprep.subr.bf16.mxu0 0
    %2598 = vmatpush1.bf16.msra.mxu0 0
    %2599 = vmatprep.subr.bf16.mxu0 0
    %2600 = vmatpush1.bf16.msra.mxu0 0
    %2601 = vmatprep.subr.bf16.mxu0 0
    %2602 = vmatpush1.bf16.msra.mxu0 0
    %2603 = vmatprep.subr.bf16.mxu0 0
    %2604 = vmatpush1.bf16.msra.mxu0 0
    %2605 = vmatprep.subr.bf16.mxu0 0
    %2606 = vmatpush1.bf16.msra.mxu0 0
    %2607 = vmatprep.subr.bf16.mxu0 0
    %2608 = vmatpush1.bf16.msra.mxu0 0
    %2609 = vmatprep.subr.bf16.mxu0 0
    %2610 = vmatpush1.bf16.msra.mxu0 0
    %2611 = vmatprep.mubr.bf16.mxu0 0
    %2612 = vmatmul.mubr.bf16.gmra.mrb[0].mxu0 %v2507
    %v2613 = vpop.f32.mrb[0].mxu0
    %v2614 = vadd.f32 %v2529, %v2613
    %v2615 = vpop.f32.mrb[0].mxu0
    %v2616 = vpop.f32.mrb[0].mxu0
    %v2617 = vadd.f32 %v2529, %v2616
    %v2618 = vpop.f32.mrb[0].mxu0
    %2619 = vdwg.mxu0
    %v2620 = vadd.f32 %v2377, %v2614
    %v2621 = vadd.f32 %v2378, %v2617
    %2622 = vst.msk [vmem:[#allocation4] sm:$0xff] %vm50, %v2620
    %2623 = vst.msk [vmem:[#allocation4 + $0x8] sm:$0xff] %vm50, %v2621
    // Predicated region
    $region54: #{tpu_custom_call.1} parent=1 // pred_check
      _
    $region55: #{tpu_custom_call.1} parent=1 // pred_check_branch
      %2625 = sbr.rel (0) target = $region57
    $region56: #{tpu_custom_call.1} parent=1 // pred_region
      %s2627 = ssub.s32 256, 256
      %2628 = vsyncadd [#allocation5], %s2627
      %s2629 = sshll.u32 [#allocation4], 4
      %s2630 = int_to_ptr.vmem [resolvable:$true] %s2629
      %2635 = dma.vmem_to_hbm [thread:$0]  %s2630, 256, %s13, [#allocation5], 128, 128, 8
    $region57: #{tpu_custom_call.1} parent=1 // pred_fallthru
      _
    // Predicated region
    $region58: #{tpu_custom_call.1} parent=1 // pred_check
      _
    $region59: #{tpu_custom_call.1} parent=1 // pred_check_branch
      %2637 = sbr.rel (0) target = $region61
    $region60: #{tpu_custom_call.1} parent=1 // pred_region
      %2638 = dma.done [#allocation5], 256
    $region61: #{tpu_custom_call.1} parent=1 // pred_fallthru
      _
    %2639 = vsyncpa [#allocation5], 1

</llo_original>
